<compile_context>
chip_gen: v6e
topology: v6e:2x2x1
jax: 0.10.0
libtpu: 0.0.40
codegen_flags: <defaults>
</compile_context>

<pallas_src>
import jax
import jax.numpy as jnp
from jax import lax
from jax.experimental import pallas as pl
from jax.experimental.pallas import tpu as pltpu


def _bilstm_kernel(len_ref, x_ref, wih_ref, whh_ref, b_ref,
                   out_ref, hid_ref, gin_sc, h_sc, c_sc):
    """One grid step == one direction (grid=(2,), parallel).

    len_ref : (Bp, 1)      int32  sequence lengths (padded rows = 0)
    x_ref   : (T*Bp, D)    bf16   time-major flattened inputs, row = t*Bp + b
    wih_ref : (D, 4H)      bf16   input->gates weights for this direction
    whh_ref : (H, 4H)      bf16   hidden->gates weights for this direction
    b_ref   : (1, 4H)      f32    combined bias (b_ih + b_hh) for this direction
    out_ref : (T, Bp, H)   f32    per-direction outputs (time-major)
    hid_ref : (Bp, H)      f32    per-direction final hidden
    gin_sc  : (T*Bp, 4H)   f32    VMEM scratch: precomputed x @ W_ih + b
    h_sc/c_sc : (Bp, H)    f32    VMEM scratch recurrent state
    """
    d = pl.program_id(0)                      # 0 = forward, 1 = backward
    T = out_ref.shape[0]
    Bp = h_sc.shape[0]
    H = h_sc.shape[1]

    # ---- hoisted input projection: ONE big MXU matmul over all T*Bp rows ----
    # (bias folded in here so it is not re-broadcast every timestep)
    gin_sc[...] = (
        jnp.dot(x_ref[...], wih_ref[...], preferred_element_type=jnp.float32)
        + b_ref[...])

    h_sc[...] = jnp.zeros_like(h_sc)
    c_sc[...] = jnp.zeros_like(c_sc)

    lens = len_ref[...]                       # (Bp, 1) int32
    whh = whh_ref[...]                        # (H, 4H) bf16

    def step(s, carry):
        # real time index: forward walks 0..T-1, backward walks T-1..0
        t = jnp.where(d == 0, s, T - 1 - s)
        row = pl.multiple_of(t * Bp, Bp)      # Bp % 8 == 0 -> sublane-aligned slice
        g_in = gin_sc[pl.ds(row, Bp), :]      # (Bp, 4H) f32, precomputed

        h = h_sc[...]                         # (Bp, H) f32
        c = c_sc[...]                         # (Bp, H) f32

        # only the small recurrent matmul stays inside the serial loop
        gates = g_in + jnp.dot(h.astype(jnp.bfloat16), whh,
                               preferred_element_type=jnp.float32)   # (Bp, 4H)

        # PyTorch gate order: i, f, g, o   (with H=32 these are intra-vreg extracts;
        # at production sizes pad H to a multiple of 128 to make them free views)
        i_g = jax.nn.sigmoid(gates[:, 0 * H:1 * H])
        f_g = jax.nn.sigmoid(gates[:, 1 * H:2 * H])
        g_g = jnp.tanh(gates[:, 2 * H:3 * H])
        o_g = jax.nn.sigmoid(gates[:, 3 * H:4 * H])

        c_new = f_g * c + i_g * g_g
        h_new = o_g * jnp.tanh(c_new)

        mask = t < lens                       # (Bp, 1) bool — valid timestep?
        h_sc[...] = jnp.where(mask, h_new, h)
        c_sc[...] = jnp.where(mask, c_new, c)
        out_ref[t] = jnp.where(mask, h_new, 0.0).astype(out_ref.dtype)
        return carry

    # fully unroll the serial recurrence for small static T
    lax.fori_loop(0, T, step, None, unroll=bool(T <= 64))

    hid_ref[...] = h_sc[...].astype(hid_ref.dtype)


def general_rnn_block(x, lengths, params):
    """Pallas-backed forward of GeneralRNNBlock (bidirectional LSTM, 1 layer).

    x: (B, T, D) f32, lengths: (B,) int.  Returns (outputs (B,T,2H), hidden (B,2H)).
    NOTE: PyTorch's pad_packed_sequence returns T_out = max(lengths); here we compute
    the full T and zero-pad past each length, which matches when max(lengths) == T.
    """
    B, T, D = x.shape
    wih, whh, b = params["w_ih"], params["w_hh"], params["b"]   # (2,D,4H),(2,H,4H),(2,1,4H)
    H = whh.shape[1]

    # pad batch to a multiple of 8 (sublanes); padded rows get length 0 so they stay
    # exactly zero through the masked recurrence and are sliced off below.
    Bp = max(8, ((B + 7) // 8) * 8)
    pad = Bp - B
    x_p = jnp.pad(x.astype(jnp.float32), ((0, pad), (0, 0), (0, 0)))
    lens_p = jnp.pad(lengths.astype(jnp.int32), (0, pad)).reshape(Bp, 1)

    # time-major, flattened (row = t*Bp + b) so the in-kernel input projection is one
    # matmul; bf16 operands for MXU throughput (f32 accumulation inside the kernel).
    x_flat = jnp.transpose(x_p, (1, 0, 2)).reshape(T * Bp, D).astype(jnp.bfloat16)
    wih_bf = wih.astype(jnp.bfloat16)
    whh_bf = whh.astype(jnp.bfloat16)
    b_f32 = b.astype(jnp.float32)

    out, hid = pl.pallas_call(
        _bilstm_kernel,
        out_shape=(
            jax.ShapeDtypeStruct((2, T, Bp, H), jnp.float32),   # per-direction outputs
            jax.ShapeDtypeStruct((2, Bp, H), jnp.float32),      # per-direction hidden
        ),
        grid_spec=pltpu.PrefetchScalarGridSpec(
            num_scalar_prefetch=0,
            grid=(2,),                                          # one grid step per direction
            in_specs=[
                pl.BlockSpec((Bp, 1), lambda d: (0, 0)),
                pl.BlockSpec((T * Bp, D), lambda d: (0, 0)),
                pl.BlockSpec((pl.Squeezed(), D, 4 * H), lambda d: (d, 0, 0)),
                pl.BlockSpec((pl.Squeezed(), H, 4 * H), lambda d: (d, 0, 0)),
                pl.BlockSpec((pl.Squeezed(), 1, 4 * H), lambda d: (d, 0, 0)),
            ],
            out_specs=(
                pl.BlockSpec((pl.Squeezed(), T, Bp, H), lambda d: (d, 0, 0, 0)),
                pl.BlockSpec((pl.Squeezed(), Bp, H), lambda d: (d, 0, 0)),
            ),
            scratch_shapes=[
                pltpu.VMEM((T * Bp, 4 * H), jnp.float32),   # precomputed input gates
                pltpu.VMEM((Bp, H), jnp.float32),           # h
                pltpu.VMEM((Bp, H), jnp.float32),           # c
            ],
        ),
        compiler_params=pltpu.CompilerParams(
            dimension_semantics=("parallel",),              # fwd/bwd fully independent
            vmem_limit_bytes=32 * 1024 * 1024,
        ),
    )(lens_p, x_flat, wih_bf, whh_bf, b_f32)

    # out[d, t, b, h] -> (B, T, 2H) with [..., :H]=fwd, [..., H:]=bwd (single relayout,
    # replaces the previous transpose + transpose + concat epilogue).
    outputs = jnp.transpose(out, (2, 1, 0, 3)).reshape(Bp, T, 2 * H)[:B]
    # hid[d, b, h] -> (B, 2H)  (== hidden.transpose(0,1).view(B, -1) in PyTorch)
    hidden = jnp.transpose(hid, (1, 0, 2)).reshape(Bp, 2 * H)[:B]
    return outputs, hidden


def general_rnn_block_ref(x, lengths, params):
    """Pure-JAX f32 reference (same math) used for a correctness check."""
    B, T, D = x.shape
    wih, whh, b = params["w_ih"], params["w_hh"], params["b"]
    H = whh.shape[1]
    lens = lengths.astype(jnp.int32)

    def run_dir(d):
        def step(carry, t):
            h, c = carry
            x_t = x[:, t, :]
            gates = x_t @ wih[d] + h @ whh[d] + b[d]
            i = jax.nn.sigmoid(gates[:, :H])
            f = jax.nn.sigmoid(gates[:, H:2 * H])
            g = jnp.tanh(gates[:, 2 * H:3 * H])
            o = jax.nn.sigmoid(gates[:, 3 * H:])
            c_new = f * c + i * g
            h_new = o * jnp.tanh(c_new)
            mask = (t < lens)[:, None]
            h = jnp.where(mask, h_new, h)
            c = jnp.where(mask, c_new, c)
            return (h, c), jnp.where(mask, h_new, 0.0)

        ts = jnp.arange(T) if d == 0 else jnp.arange(T - 1, -1, -1)
        (h, _), outs = lax.scan(step, (jnp.zeros((B, H)), jnp.zeros((B, H))), ts)
        if d == 1:
            outs = outs[::-1]
        return jnp.transpose(outs, (1, 0, 2)), h

    o0, h0 = run_dir(0)
    o1, h1 = run_dir(1)
    return jnp.concatenate([o0, o1], -1), jnp.concatenate([h0, h1], -1)


if __name__ == "__main__":
    B, T, D, H = 2, 8, 16, 32   # batch, seq, word_embedding_size, hidden_size

    key = jax.random.PRNGKey(0)
    k1, k2, k3, k4 = jax.random.split(key, 4)
    scale = 1.0 / jnp.sqrt(H)
    params = {
        # pre-transposed per-direction weights: [0]=forward, [1]=backward (reverse)
        "w_ih": jax.random.uniform(k1, (2, D, 4 * H), jnp.float32, -scale, scale),
        "w_hh": jax.random.uniform(k2, (2, H, 4 * H), jnp.float32, -scale, scale),
        "b":    jax.random.uniform(k3, (2, 1, 4 * H), jnp.float32, -scale, scale),
    }
    x = jax.random.normal(k4, (B, T, D), jnp.float32)
    lengths = jnp.array([T, 5], jnp.int32)   # max(lengths) == T so padded length matches

    outputs, hidden = jax.block_until_ready(general_rnn_block(x, lengths, params))

    assert outputs.shape == (B, T, 2 * H), outputs.shape
    assert hidden.shape == (B, 2 * H), hidden.shape

    ref_out, ref_hid = general_rnn_block_ref(x, lengths, params)
    # kernel uses bf16 matmul operands (f32 accumulate / f32 state), so the tolerance
    # vs the f32 reference is loosened accordingly.
    assert jnp.allclose(outputs, ref_out, atol=3e-2, rtol=3e-2)
    assert jnp.allclose(hidden, ref_hid, atol=3e-2, rtol=3e-2)

    print("KERNEL_OK")
</pallas_src>

<mosaic_0001>
module attributes {stable_mosaic.version = 11 : i64} {
  func.func @_bilstm_kernel(%arg0: i32, %arg1: memref<8x1xi32, #tpu.memory_space<vmem>>, %arg2: memref<64x16xbf16, #tpu.memory_space<vmem>>, %arg3: memref<1x16x128xbf16, #tpu.memory_space<vmem>>, %arg4: memref<1x32x128xbf16, #tpu.memory_space<vmem>>, %arg5: memref<1x1x128xf32, #tpu.memory_space<vmem>>, %arg6: memref<1x8x8x32xf32, #tpu.memory_space<vmem>>, %arg7: memref<1x8x32xf32, #tpu.memory_space<vmem>>, %arg8: memref<64x128xf32, #tpu.memory_space<vmem>>, %arg9: memref<8x32xf32, #tpu.memory_space<vmem>>, %arg10: memref<8x32xf32, #tpu.memory_space<vmem>>) attributes {dimension_semantics = [#tpu.dimension_semantics<parallel>], iteration_bounds = array<i64: 2>, scalar_prefetch = 0 : i64, scratch_operands = 3 : i64, tpu.core_type = #tpu.core_type<tc>, window_params = [{pipeline_mode = #tpu.pipeline_mode<synchronous>, transform_indices = @transform_0, window_bounds = array<i64: 8, 1>}, {pipeline_mode = #tpu.pipeline_mode<synchronous>, transform_indices = @transform_1, window_bounds = array<i64: 64, 16>}, {transform_indices = @transform_2, window_bounds = array<i64: 1, 16, 128>}, {transform_indices = @transform_3, window_bounds = array<i64: 1, 32, 128>}, {transform_indices = @transform_4, window_bounds = array<i64: 1, 1, 128>}, {transform_indices = @transform_5, window_bounds = array<i64: 1, 8, 8, 32>}, {transform_indices = @transform_6, window_bounds = array<i64: 1, 8, 32>}]} {
    %c0 = arith.constant 0 : index
    %c0_0 = arith.constant 0 : index
    %0 = vector.load %arg2[%c0, %c0_0] : memref<64x16xbf16, #tpu.memory_space<vmem>>, vector<64x16xbf16>
    %c0_1 = arith.constant 0 : index
    %c0_2 = arith.constant 0 : index
    %c0_3 = arith.constant 0 : index
    %1 = vector.load %arg3[%c0_1, %c0_2, %c0_3] : memref<1x16x128xbf16, #tpu.memory_space<vmem>>, vector<1x16x128xbf16>
    %2 = vector.shape_cast %1 : vector<1x16x128xbf16> to vector<16x128xbf16>
    %cst = arith.constant dense<0.000000e+00> : vector<64x128xf32>
    %3 = tpu.matmul %0, %2, %cst {dimension_numbers = #tpu.dot_dimension_numbers<[1], [0], [0], [1], [0, 0, 1, 1], [], []>} : vector<64x16xbf16>, vector<16x128xbf16>, vector<64x128xf32> -> vector<64x128xf32>
    %c0_4 = arith.constant 0 : index
    %c0_5 = arith.constant 0 : index
    %c0_6 = arith.constant 0 : index
    %4 = vector.load %arg5[%c0_4, %c0_5, %c0_6] : memref<1x1x128xf32, #tpu.memory_space<vmem>>, vector<1x1x128xf32>
    %5 = vector.shape_cast %4 : vector<1x1x128xf32> to vector<1x128xf32>
    %6 = vector.broadcast %5 : vector<1x128xf32> to vector<64x128xf32>
    %7 = arith.addf %3, %6 : vector<64x128xf32>
    %c0_7 = arith.constant 0 : index
    %c0_8 = arith.constant 0 : index
    %8 = vector.load %arg8[%c0_7, %c0_8] : memref<64x128xf32, #tpu.memory_space<vmem>>, vector<64x128xf32>
    tpu.vector_store %arg8[%c0_7, %c0_8], %7 {strides = array<i32>} : memref<64x128xf32, #tpu.memory_space<vmem>>, vector<64x128xf32>,
    %cst_9 = arith.constant 0.000000e+00 : f32
    %9 = vector.broadcast %cst_9 : f32 to vector<8x32xf32>
    %c0_10 = arith.constant 0 : index
    %c0_11 = arith.constant 0 : index
    %10 = vector.load %arg9[%c0_10, %c0_11] : memref<8x32xf32, #tpu.memory_space<vmem>>, vector<8x32xf32>
    tpu.vector_store %arg9[%c0_10, %c0_11], %9 {strides = array<i32>} : memref<8x32xf32, #tpu.memory_space<vmem>>, vector<8x32xf32>,
    %cst_12 = arith.constant 0.000000e+00 : f32
    %11 = vector.broadcast %cst_12 : f32 to vector<8x32xf32>
    %c0_13 = arith.constant 0 : index
    %c0_14 = arith.constant 0 : index
    %12 = vector.load %arg10[%c0_13, %c0_14] : memref<8x32xf32, #tpu.memory_space<vmem>>, vector<8x32xf32>
    tpu.vector_store %arg10[%c0_13, %c0_14], %11 {strides = array<i32>} : memref<8x32xf32, #tpu.memory_space<vmem>>, vector<8x32xf32>,
    %c0_15 = arith.constant 0 : index
    %c0_16 = arith.constant 0 : index
    %13 = vector.load %arg1[%c0_15, %c0_16] : memref<8x1xi32, #tpu.memory_space<vmem>>, vector<8x1xi32>
    %c0_17 = arith.constant 0 : index
    %c0_18 = arith.constant 0 : index
    %c0_19 = arith.constant 0 : index
    %14 = vector.load %arg4[%c0_17, %c0_18, %c0_19] : memref<1x32x128xbf16, #tpu.memory_space<vmem>>, vector<1x32x128xbf16>
    %15 = vector.shape_cast %14 : vector<1x32x128xbf16> to vector<32x128xbf16>
    %c0_i32 = arith.constant 0 : i32
    %c0_i32_20 = arith.constant 0 : i32
    %16 = arith.cmpi eq, %arg0, %c0_i32_20 : i32
    %c7_i32 = arith.constant 7 : i32
    %17 = arith.subi %c7_i32, %c0_i32 : i32
    %18 = arith.select %16, %c0_i32, %17 : i32
    %c8_i32 = arith.constant 8 : i32
    %19 = arith.muli %18, %c8_i32 : i32
    %20 = tpu.assume_multiple %19, 8 : i32
    %21 = arith.index_cast %20 : i32 to index
    %c0_21 = arith.constant 0 : index
    %22 = vector.load %arg8[%21, %c0_21] : memref<64x128xf32, #tpu.memory_space<vmem>>, vector<8x128xf32>
    %c0_22 = arith.constant 0 : index
    %c0_23 = arith.constant 0 : index
    %23 = vector.load %arg9[%c0_22, %c0_23] : memref<8x32xf32, #tpu.memory_space<vmem>>, vector<8x32xf32>
    %c0_24 = arith.constant 0 : index
    %c0_25 = arith.constant 0 : index
    %24 = vector.load %arg10[%c0_24, %c0_25] : memref<8x32xf32, #tpu.memory_space<vmem>>, vector<8x32xf32>
    %25 = arith.truncf %23 : vector<8x32xf32> to vector<8x32xbf16>
    %cst_26 = arith.constant dense<0.000000e+00> : vector<8x128xf32>
    %26 = tpu.matmul %25, %15, %cst_26 {dimension_numbers = #tpu.dot_dimension_numbers<[1], [0], [0], [1], [0, 0, 1, 1], [], []>} : vector<8x32xbf16>, vector<32x128xbf16>, vector<8x128xf32> -> vector<8x128xf32>
    %27 = arith.addf %22, %26 : vector<8x128xf32>
    %28 = vector.extract_strided_slice %27 {offsets = [0, 0], sizes = [8, 32], strides = [1, 1]} : vector<8x128xf32> to vector<8x32xf32>
    %29 = arith.negf %28 : vector<8x32xf32>
    %30 = math.exp %29 : vector<8x32xf32>
    %cst_27 = arith.constant 1.000000e+00 : f32
    %31 = vector.broadcast %cst_27 : f32 to vector<8x32xf32>
    %32 = arith.addf %31, %30 : vector<8x32xf32>
    %33 = arith.divf %31, %32 : vector<8x32xf32>
    %34 = vector.extract_strided_slice %27 {offsets = [0, 32], sizes = [8, 32], strides = [1, 1]} : vector<8x128xf32> to vector<8x32xf32>
    %35 = arith.negf %34 : vector<8x32xf32>
    %36 = math.exp %35 : vector<8x32xf32>
    %cst_28 = arith.constant 1.000000e+00 : f32
    %37 = vector.broadcast %cst_28 : f32 to vector<8x32xf32>
    %38 = arith.addf %37, %36 : vector<8x32xf32>
    %39 = arith.divf %37, %38 : vector<8x32xf32>
    %40 = vector.extract_strided_slice %27 {offsets = [0, 64], sizes = [8, 32], strides = [1, 1]} : vector<8x128xf32> to vector<8x32xf32>
    %41 = math.tanh %40 : vector<8x32xf32>
    %42 = vector.extract_strided_slice %27 {offsets = [0, 96], sizes = [8, 32], strides = [1, 1]} : vector<8x128xf32> to vector<8x32xf32>
    %43 = arith.negf %42 : vector<8x32xf32>
    %44 = math.exp %43 : vector<8x32xf32>
    %cst_29 = arith.constant 1.000000e+00 : f32
    %45 = vector.broadcast %cst_29 : f32 to vector<8x32xf32>
    %46 = arith.addf %45, %44 : vector<8x32xf32>
    %47 = arith.divf %45, %46 : vector<8x32xf32>
    %48 = arith.mulf %39, %24 : vector<8x32xf32>
    %49 = arith.mulf %33, %41 : vector<8x32xf32>
    %50 = arith.addf %48, %49 : vector<8x32xf32>
    %51 = math.tanh %50 : vector<8x32xf32>
    %52 = arith.mulf %47, %51 : vector<8x32xf32>
    %53 = vector.broadcast %18 : i32 to vector<8x1xi32>
    %54 = arith.cmpi slt, %53, %13 : vector<8x1xi32>
    %55 = vector.shape_cast %54 : vector<8x1xi1> to vector<8x1xi1>
    %56 = vector.broadcast %55 : vector<8x1xi1> to vector<8x32xi1>
    %57 = arith.select %56, %52, %23 : vector<8x32xi1>, vector<8x32xf32>
    %c0_30 = arith.constant 0 : index
    %c0_31 = arith.constant 0 : index
    %58 = vector.load %arg9[%c0_30, %c0_31] : memref<8x32xf32, #tpu.memory_space<vmem>>, vector<8x32xf32>
    tpu.vector_store %arg9[%c0_30, %c0_31], %57 {strides = array<i32>} : memref<8x32xf32, #tpu.memory_space<vmem>>, vector<8x32xf32>,
    %59 = vector.shape_cast %54 : vector<8x1xi1> to vector<8x1xi1>
    %60 = vector.broadcast %59 : vector<8x1xi1> to vector<8x32xi1>
    %61 = arith.select %60, %50, %24 : vector<8x32xi1>, vector<8x32xf32>
    %c0_32 = arith.constant 0 : index
    %c0_33 = arith.constant 0 : index
    %62 = vector.load %arg10[%c0_32, %c0_33] : memref<8x32xf32, #tpu.memory_space<vmem>>, vector<8x32xf32>
    tpu.vector_store %arg10[%c0_32, %c0_33], %61 {strides = array<i32>} : memref<8x32xf32, #tpu.memory_space<vmem>>, vector<8x32xf32>,
    %cst_34 = arith.constant 0.000000e+00 : f32
    %63 = vector.shape_cast %54 : vector<8x1xi1> to vector<8x1xi1>
    %64 = vector.broadcast %63 : vector<8x1xi1> to vector<8x32xi1>
    %65 = vector.broadcast %cst_34 : f32 to vector<8x32xf32>
    %66 = arith.select %64, %52, %65 : vector<8x32xi1>, vector<8x32xf32>
    %c0_35 = arith.constant 0 : index
    %67 = arith.index_cast %18 : i32 to index
    %c0_36 = arith.constant 0 : index
    %c0_37 = arith.constant 0 : index
    %68 = vector.load %arg6[%c0_35, %67, %c0_36, %c0_37] : memref<1x8x8x32xf32, #tpu.memory_space<vmem>>, vector<1x1x8x32xf32>
    %69 = vector.shape_cast %68 : vector<1x1x8x32xf32> to vector<8x32xf32>
    %70 = vector.shape_cast %66 : vector<8x32xf32> to vector<1x1x8x32xf32>
    tpu.vector_store %arg6[%c0_35, %67, %c0_36, %c0_37], %70 {strides = array<i32>} : memref<1x8x8x32xf32, #tpu.memory_space<vmem>>, vector<1x1x8x32xf32>,
    %c1_i32 = arith.constant 1 : i32
    %c0_i32_38 = arith.constant 0 : i32
    %71 = arith.cmpi eq, %arg0, %c0_i32_38 : i32
    %c7_i32_39 = arith.constant 7 : i32
    %72 = arith.subi %c7_i32_39, %c1_i32 : i32
    %73 = arith.select %71, %c1_i32, %72 : i32
    %c8_i32_40 = arith.constant 8 : i32
    %74 = arith.muli %73, %c8_i32_40 : i32
    %75 = tpu.assume_multiple %74, 8 : i32
    %76 = arith.index_cast %75 : i32 to index
    %c0_41 = arith.constant 0 : index
    %77 = vector.load %arg8[%76, %c0_41] : memref<64x128xf32, #tpu.memory_space<vmem>>, vector<8x128xf32>
    %c0_42 = arith.constant 0 : index
    %c0_43 = arith.constant 0 : index
    %78 = vector.load %arg9[%c0_42, %c0_43] : memref<8x32xf32, #tpu.memory_space<vmem>>, vector<8x32xf32>
    %c0_44 = arith.constant 0 : index
    %c0_45 = arith.constant 0 : index
    %79 = vector.load %arg10[%c0_44, %c0_45] : memref<8x32xf32, #tpu.memory_space<vmem>>, vector<8x32xf32>
    %80 = arith.truncf %78 : vector<8x32xf32> to vector<8x32xbf16>
    %cst_46 = arith.constant dense<0.000000e+00> : vector<8x128xf32>
    %81 = tpu.matmul %80, %15, %cst_46 {dimension_numbers = #tpu.dot_dimension_numbers<[1], [0], [0], [1], [0, 0, 1, 1], [], []>} : vector<8x32xbf16>, vector<32x128xbf16>, vector<8x128xf32> -> vector<8x128xf32>
    %82 = arith.addf %77, %81 : vector<8x128xf32>
    %83 = vector.extract_strided_slice %82 {offsets = [0, 0], sizes = [8, 32], strides = [1, 1]} : vector<8x128xf32> to vector<8x32xf32>
    %84 = arith.negf %83 : vector<8x32xf32>
    %85 = math.exp %84 : vector<8x32xf32>
    %cst_47 = arith.constant 1.000000e+00 : f32
    %86 = vector.broadcast %cst_47 : f32 to vector<8x32xf32>
    %87 = arith.addf %86, %85 : vector<8x32xf32>
    %88 = arith.divf %86, %87 : vector<8x32xf32>
    %89 = vector.extract_strided_slice %82 {offsets = [0, 32], sizes = [8, 32], strides = [1, 1]} : vector<8x128xf32> to vector<8x32xf32>
    %90 = arith.negf %89 : vector<8x32xf32>
    %91 = math.exp %90 : vector<8x32xf32>
    %cst_48 = arith.constant 1.000000e+00 : f32
    %92 = vector.broadcast %cst_48 : f32 to vector<8x32xf32>
    %93 = arith.addf %92, %91 : vector<8x32xf32>
    %94 = arith.divf %92, %93 : vector<8x32xf32>
    %95 = vector.extract_strided_slice %82 {offsets = [0, 64], sizes = [8, 32], strides = [1, 1]} : vector<8x128xf32> to vector<8x32xf32>
    %96 = math.tanh %95 : vector<8x32xf32>
    %97 = vector.extract_strided_slice %82 {offsets = [0, 96], sizes = [8, 32], strides = [1, 1]} : vector<8x128xf32> to vector<8x32xf32>
    %98 = arith.negf %97 : vector<8x32xf32>
    %99 = math.exp %98 : vector<8x32xf32>
    %cst_49 = arith.constant 1.000000e+00 : f32
    %100 = vector.broadcast %cst_49 : f32 to vector<8x32xf32>
    %101 = arith.addf %100, %99 : vector<8x32xf32>
    %102 = arith.divf %100, %101 : vector<8x32xf32>
    %103 = arith.mulf %94, %79 : vector<8x32xf32>
    %104 = arith.mulf %88, %96 : vector<8x32xf32>
    %105 = arith.addf %103, %104 : vector<8x32xf32>
    %106 = math.tanh %105 : vector<8x32xf32>
    %107 = arith.mulf %102, %106 : vector<8x32xf32>
    %108 = vector.broadcast %73 : i32 to vector<8x1xi32>
    %109 = arith.cmpi slt, %108, %13 : vector<8x1xi32>
    %110 = vector.shape_cast %109 : vector<8x1xi1> to vector<8x1xi1>
    %111 = vector.broadcast %110 : vector<8x1xi1> to vector<8x32xi1>
    %112 = arith.select %111, %107, %78 : vector<8x32xi1>, vector<8x32xf32>
    %c0_50 = arith.constant 0 : index
    %c0_51 = arith.constant 0 : index
    %113 = vector.load %arg9[%c0_50, %c0_51] : memref<8x32xf32, #tpu.memory_space<vmem>>, vector<8x32xf32>
    tpu.vector_store %arg9[%c0_50, %c0_51], %112 {strides = array<i32>} : memref<8x32xf32, #tpu.memory_space<vmem>>, vector<8x32xf32>,
    %114 = vector.shape_cast %109 : vector<8x1xi1> to vector<8x1xi1>
    %115 = vector.broadcast %114 : vector<8x1xi1> to vector<8x32xi1>
    %116 = arith.select %115, %105, %79 : vector<8x32xi1>, vector<8x32xf32>
    %c0_52 = arith.constant 0 : index
    %c0_53 = arith.constant 0 : index
    %117 = vector.load %arg10[%c0_52, %c0_53] : memref<8x32xf32, #tpu.memory_space<vmem>>, vector<8x32xf32>
    tpu.vector_store %arg10[%c0_52, %c0_53], %116 {strides = array<i32>} : memref<8x32xf32, #tpu.memory_space<vmem>>, vector<8x32xf32>,
    %cst_54 = arith.constant 0.000000e+00 : f32
    %118 = vector.shape_cast %109 : vector<8x1xi1> to vector<8x1xi1>
    %119 = vector.broadcast %118 : vector<8x1xi1> to vector<8x32xi1>
    %120 = vector.broadcast %cst_54 : f32 to vector<8x32xf32>
    %121 = arith.select %119, %107, %120 : vector<8x32xi1>, vector<8x32xf32>
    %c0_55 = arith.constant 0 : index
    %122 = arith.index_cast %73 : i32 to index
    %c0_56 = arith.constant 0 : index
    %c0_57 = arith.constant 0 : index
    %123 = vector.load %arg6[%c0_55, %122, %c0_56, %c0_57] : memref<1x8x8x32xf32, #tpu.memory_space<vmem>>, vector<1x1x8x32xf32>
    %124 = vector.shape_cast %123 : vector<1x1x8x32xf32> to vector<8x32xf32>
    %125 = vector.shape_cast %121 : vector<8x32xf32> to vector<1x1x8x32xf32>
    tpu.vector_store %arg6[%c0_55, %122, %c0_56, %c0_57], %125 {strides = array<i32>} : memref<1x8x8x32xf32, #tpu.memory_space<vmem>>, vector<1x1x8x32xf32>,
    %c2_i32 = arith.constant 2 : i32
    %c0_i32_58 = arith.constant 0 : i32
    %126 = arith.cmpi eq, %arg0, %c0_i32_58 : i32
    %c7_i32_59 = arith.constant 7 : i32
    %127 = arith.subi %c7_i32_59, %c2_i32 : i32
    %128 = arith.select %126, %c2_i32, %127 : i32
    %c8_i32_60 = arith.constant 8 : i32
    %129 = arith.muli %128, %c8_i32_60 : i32
    %130 = tpu.assume_multiple %129, 8 : i32
    %131 = arith.index_cast %130 : i32 to index
    %c0_61 = arith.constant 0 : index
    %132 = vector.load %arg8[%131, %c0_61] : memref<64x128xf32, #tpu.memory_space<vmem>>, vector<8x128xf32>
    %c0_62 = arith.constant 0 : index
    %c0_63 = arith.constant 0 : index
    %133 = vector.load %arg9[%c0_62, %c0_63] : memref<8x32xf32, #tpu.memory_space<vmem>>, vector<8x32xf32>
    %c0_64 = arith.constant 0 : index
    %c0_65 = arith.constant 0 : index
    %134 = vector.load %arg10[%c0_64, %c0_65] : memref<8x32xf32, #tpu.memory_space<vmem>>, vector<8x32xf32>
    %135 = arith.truncf %133 : vector<8x32xf32> to vector<8x32xbf16>
    %cst_66 = arith.constant dense<0.000000e+00> : vector<8x128xf32>
    %136 = tpu.matmul %135, %15, %cst_66 {dimension_numbers = #tpu.dot_dimension_numbers<[1], [0], [0], [1], [0, 0, 1, 1], [], []>} : vector<8x32xbf16>, vector<32x128xbf16>, vector<8x128xf32> -> vector<8x128xf32>
    %137 = arith.addf %132, %136 : vector<8x128xf32>
    %138 = vector.extract_strided_slice %137 {offsets = [0, 0], sizes = [8, 32], strides = [1, 1]} : vector<8x128xf32> to vector<8x32xf32>
    %139 = arith.negf %138 : vector<8x32xf32>
    %140 = math.exp %139 : vector<8x32xf32>
    %cst_67 = arith.constant 1.000000e+00 : f32
    %141 = vector.broadcast %cst_67 : f32 to vector<8x32xf32>
    %142 = arith.addf %141, %140 : vector<8x32xf32>
    %143 = arith.divf %141, %142 : vector<8x32xf32>
    %144 = vector.extract_strided_slice %137 {offsets = [0, 32], sizes = [8, 32], strides = [1, 1]} : vector<8x128xf32> to vector<8x32xf32>
    %145 = arith.negf %144 : vector<8x32xf32>
    %146 = math.exp %145 : vector<8x32xf32>
    %cst_68 = arith.constant 1.000000e+00 : f32
    %147 = vector.broadcast %cst_68 : f32 to vector<8x32xf32>
    %148 = arith.addf %147, %146 : vector<8x32xf32>
    %149 = arith.divf %147, %148 : vector<8x32xf32>
    %150 = vector.extract_strided_slice %137 {offsets = [0, 64], sizes = [8, 32], strides = [1, 1]} : vector<8x128xf32> to vector<8x32xf32>
    %151 = math.tanh %150 : vector<8x32xf32>
    %152 = vector.extract_strided_slice %137 {offsets = [0, 96], sizes = [8, 32], strides = [1, 1]} : vector<8x128xf32> to vector<8x32xf32>
    %153 = arith.negf %152 : vector<8x32xf32>
    %154 = math.exp %153 : vector<8x32xf32>
    %cst_69 = arith.constant 1.000000e+00 : f32
    %155 = vector.broadcast %cst_69 : f32 to vector<8x32xf32>
    %156 = arith.addf %155, %154 : vector<8x32xf32>
    %157 = arith.divf %155, %156 : vector<8x32xf32>
    %158 = arith.mulf %149, %134 : vector<8x32xf32>
    %159 = arith.mulf %143, %151 : vector<8x32xf32>
    %160 = arith.addf %158, %159 : vector<8x32xf32>
    %161 = math.tanh %160 : vector<8x32xf32>
    %162 = arith.mulf %157, %161 : vector<8x32xf32>
    %163 = vector.broadcast %128 : i32 to vector<8x1xi32>
    %164 = arith.cmpi slt, %163, %13 : vector<8x1xi32>
    %165 = vector.shape_cast %164 : vector<8x1xi1> to vector<8x1xi1>
    %166 = vector.broadcast %165 : vector<8x1xi1> to vector<8x32xi1>
    %167 = arith.select %166, %162, %133 : vector<8x32xi1>, vector<8x32xf32>
    %c0_70 = arith.constant 0 : index
    %c0_71 = arith.constant 0 : index
    %168 = vector.load %arg9[%c0_70, %c0_71] : memref<8x32xf32, #tpu.memory_space<vmem>>, vector<8x32xf32>
    tpu.vector_store %arg9[%c0_70, %c0_71], %167 {strides = array<i32>} : memref<8x32xf32, #tpu.memory_space<vmem>>, vector<8x32xf32>,
    %169 = vector.shape_cast %164 : vector<8x1xi1> to vector<8x1xi1>
    %170 = vector.broadcast %169 : vector<8x1xi1> to vector<8x32xi1>
    %171 = arith.select %170, %160, %134 : vector<8x32xi1>, vector<8x32xf32>
    %c0_72 = arith.constant 0 : index
    %c0_73 = arith.constant 0 : index
    %172 = vector.load %arg10[%c0_72, %c0_73] : memref<8x32xf32, #tpu.memory_space<vmem>>, vector<8x32xf32>
    tpu.vector_store %arg10[%c0_72, %c0_73], %171 {strides = array<i32>} : memref<8x32xf32, #tpu.memory_space<vmem>>, vector<8x32xf32>,
    %cst_74 = arith.constant 0.000000e+00 : f32
    %173 = vector.shape_cast %164 : vector<8x1xi1> to vector<8x1xi1>
    %174 = vector.broadcast %173 : vector<8x1xi1> to vector<8x32xi1>
    %175 = vector.broadcast %cst_74 : f32 to vector<8x32xf32>
    %176 = arith.select %174, %162, %175 : vector<8x32xi1>, vector<8x32xf32>
    %c0_75 = arith.constant 0 : index
    %177 = arith.index_cast %128 : i32 to index
    %c0_76 = arith.constant 0 : index
    %c0_77 = arith.constant 0 : index
    %178 = vector.load %arg6[%c0_75, %177, %c0_76, %c0_77] : memref<1x8x8x32xf32, #tpu.memory_space<vmem>>, vector<1x1x8x32xf32>
    %179 = vector.shape_cast %178 : vector<1x1x8x32xf32> to vector<8x32xf32>
    %180 = vector.shape_cast %176 : vector<8x32xf32> to vector<1x1x8x32xf32>
    tpu.vector_store %arg6[%c0_75, %177, %c0_76, %c0_77], %180 {strides = array<i32>} : memref<1x8x8x32xf32, #tpu.memory_space<vmem>>, vector<1x1x8x32xf32>,
    %c3_i32 = arith.constant 3 : i32
    %c0_i32_78 = arith.constant 0 : i32
    %181 = arith.cmpi eq, %arg0, %c0_i32_78 : i32
    %c7_i32_79 = arith.constant 7 : i32
    %182 = arith.subi %c7_i32_79, %c3_i32 : i32
    %183 = arith.select %181, %c3_i32, %182 : i32
    %c8_i32_80 = arith.constant 8 : i32
    %184 = arith.muli %183, %c8_i32_80 : i32
    %185 = tpu.assume_multiple %184, 8 : i32
    %186 = arith.index_cast %185 : i32 to index
    %c0_81 = arith.constant 0 : index
    %187 = vector.load %arg8[%186, %c0_81] : memref<64x128xf32, #tpu.memory_space<vmem>>, vector<8x128xf32>
    %c0_82 = arith.constant 0 : index
    %c0_83 = arith.constant 0 : index
    %188 = vector.load %arg9[%c0_82, %c0_83] : memref<8x32xf32, #tpu.memory_space<vmem>>, vector<8x32xf32>
    %c0_84 = arith.constant 0 : index
    %c0_85 = arith.constant 0 : index
    %189 = vector.load %arg10[%c0_84, %c0_85] : memref<8x32xf32, #tpu.memory_space<vmem>>, vector<8x32xf32>
    %190 = arith.truncf %188 : vector<8x32xf32> to vector<8x32xbf16>
    %cst_86 = arith.constant dense<0.000000e+00> : vector<8x128xf32>
    %191 = tpu.matmul %190, %15, %cst_86 {dimension_numbers = #tpu.dot_dimension_numbers<[1], [0], [0], [1], [0, 0, 1, 1], [], []>} : vector<8x32xbf16>, vector<32x128xbf16>, vector<8x128xf32> -> vector<8x128xf32>
    %192 = arith.addf %187, %191 : vector<8x128xf32>
    %193 = vector.extract_strided_slice %192 {offsets = [0, 0], sizes = [8, 32], strides = [1, 1]} : vector<8x128xf32> to vector<8x32xf32>
    %194 = arith.negf %193 : vector<8x32xf32>
    %195 = math.exp %194 : vector<8x32xf32>
    %cst_87 = arith.constant 1.000000e+00 : f32
    %196 = vector.broadcast %cst_87 : f32 to vector<8x32xf32>
    %197 = arith.addf %196, %195 : vector<8x32xf32>
    %198 = arith.divf %196, %197 : vector<8x32xf32>
    %199 = vector.extract_strided_slice %192 {offsets = [0, 32], sizes = [8, 32], strides = [1, 1]} : vector<8x128xf32> to vector<8x32xf32>
    %200 = arith.negf %199 : vector<8x32xf32>
    %201 = math.exp %200 : vector<8x32xf32>
    %cst_88 = arith.constant 1.000000e+00 : f32
    %202 = vector.broadcast %cst_88 : f32 to vector<8x32xf32>
    %203 = arith.addf %202, %201 : vector<8x32xf32>
    %204 = arith.divf %202, %203 : vector<8x32xf32>
    %205 = vector.extract_strided_slice %192 {offsets = [0, 64], sizes = [8, 32], strides = [1, 1]} : vector<8x128xf32> to vector<8x32xf32>
    %206 = math.tanh %205 : vector<8x32xf32>
    %207 = vector.extract_strided_slice %192 {offsets = [0, 96], sizes = [8, 32], strides = [1, 1]} : vector<8x128xf32> to vector<8x32xf32>
    %208 = arith.negf %207 : vector<8x32xf32>
    %209 = math.exp %208 : vector<8x32xf32>
    %cst_89 = arith.constant 1.000000e+00 : f32
    %210 = vector.broadcast %cst_89 : f32 to vector<8x32xf32>
    %211 = arith.addf %210, %209 : vector<8x32xf32>
    %212 = arith.divf %210, %211 : vector<8x32xf32>
    %213 = arith.mulf %204, %189 : vector<8x32xf32>
    %214 = arith.mulf %198, %206 : vector<8x32xf32>
    %215 = arith.addf %213, %214 : vector<8x32xf32>
    %216 = math.tanh %215 : vector<8x32xf32>
    %217 = arith.mulf %212, %216 : vector<8x32xf32>
    %218 = vector.broadcast %183 : i32 to vector<8x1xi32>
    %219 = arith.cmpi slt, %218, %13 : vector<8x1xi32>
    %220 = vector.shape_cast %219 : vector<8x1xi1> to vector<8x1xi1>
    %221 = vector.broadcast %220 : vector<8x1xi1> to vector<8x32xi1>
    %222 = arith.select %221, %217, %188 : vector<8x32xi1>, vector<8x32xf32>
    %c0_90 = arith.constant 0 : index
    %c0_91 = arith.constant 0 : index
    %223 = vector.load %arg9[%c0_90, %c0_91] : memref<8x32xf32, #tpu.memory_space<vmem>>, vector<8x32xf32>
    tpu.vector_store %arg9[%c0_90, %c0_91], %222 {strides = array<i32>} : memref<8x32xf32, #tpu.memory_space<vmem>>, vector<8x32xf32>,
    %224 = vector.shape_cast %219 : vector<8x1xi1> to vector<8x1xi1>
    %225 = vector.broadcast %224 : vector<8x1xi1> to vector<8x32xi1>
    %226 = arith.select %225, %215, %189 : vector<8x32xi1>, vector<8x32xf32>
    %c0_92 = arith.constant 0 : index
    %c0_93 = arith.constant 0 : index
    %227 = vector.load %arg10[%c0_92, %c0_93] : memref<8x32xf32, #tpu.memory_space<vmem>>, vector<8x32xf32>
    tpu.vector_store %arg10[%c0_92, %c0_93], %226 {strides = array<i32>} : memref<8x32xf32, #tpu.memory_space<vmem>>, vector<8x32xf32>,
    %cst_94 = arith.constant 0.000000e+00 : f32
    %228 = vector.shape_cast %219 : vector<8x1xi1> to vector<8x1xi1>
    %229 = vector.broadcast %228 : vector<8x1xi1> to vector<8x32xi1>
    %230 = vector.broadcast %cst_94 : f32 to vector<8x32xf32>
    %231 = arith.select %229, %217, %230 : vector<8x32xi1>, vector<8x32xf32>
    %c0_95 = arith.constant 0 : index
    %232 = arith.index_cast %183 : i32 to index
    %c0_96 = arith.constant 0 : index
    %c0_97 = arith.constant 0 : index
    %233 = vector.load %arg6[%c0_95, %232, %c0_96, %c0_97] : memref<1x8x8x32xf32, #tpu.memory_space<vmem>>, vector<1x1x8x32xf32>
    %234 = vector.shape_cast %233 : vector<1x1x8x32xf32> to vector<8x32xf32>
    %235 = vector.shape_cast %231 : vector<8x32xf32> to vector<1x1x8x32xf32>
    tpu.vector_store %arg6[%c0_95, %232, %c0_96, %c0_97], %235 {strides = array<i32>} : memref<1x8x8x32xf32, #tpu.memory_space<vmem>>, vector<1x1x8x32xf32>,
    %c4_i32 = arith.constant 4 : i32
    %c0_i32_98 = arith.constant 0 : i32
    %236 = arith.cmpi eq, %arg0, %c0_i32_98 : i32
    %c7_i32_99 = arith.constant 7 : i32
    %237 = arith.subi %c7_i32_99, %c4_i32 : i32
    %238 = arith.select %236, %c4_i32, %237 : i32
    %c8_i32_100 = arith.constant 8 : i32
    %239 = arith.muli %238, %c8_i32_100 : i32
    %240 = tpu.assume_multiple %239, 8 : i32
    %241 = arith.index_cast %240 : i32 to index
    %c0_101 = arith.constant 0 : index
    %242 = vector.load %arg8[%241, %c0_101] : memref<64x128xf32, #tpu.memory_space<vmem>>, vector<8x128xf32>
    %c0_102 = arith.constant 0 : index
    %c0_103 = arith.constant 0 : index
    %243 = vector.load %arg9[%c0_102, %c0_103] : memref<8x32xf32, #tpu.memory_space<vmem>>, vector<8x32xf32>
    %c0_104 = arith.constant 0 : index
    %c0_105 = arith.constant 0 : index
    %244 = vector.load %arg10[%c0_104, %c0_105] : memref<8x32xf32, #tpu.memory_space<vmem>>, vector<8x32xf32>
    %245 = arith.truncf %243 : vector<8x32xf32> to vector<8x32xbf16>
    %cst_106 = arith.constant dense<0.000000e+00> : vector<8x128xf32>
    %246 = tpu.matmul %245, %15, %cst_106 {dimension_numbers = #tpu.dot_dimension_numbers<[1], [0], [0], [1], [0, 0, 1, 1], [], []>} : vector<8x32xbf16>, vector<32x128xbf16>, vector<8x128xf32> -> vector<8x128xf32>
    %247 = arith.addf %242, %246 : vector<8x128xf32>
    %248 = vector.extract_strided_slice %247 {offsets = [0, 0], sizes = [8, 32], strides = [1, 1]} : vector<8x128xf32> to vector<8x32xf32>
    %249 = arith.negf %248 : vector<8x32xf32>
    %250 = math.exp %249 : vector<8x32xf32>
    %cst_107 = arith.constant 1.000000e+00 : f32
    %251 = vector.broadcast %cst_107 : f32 to vector<8x32xf32>
    %252 = arith.addf %251, %250 : vector<8x32xf32>
    %253 = arith.divf %251, %252 : vector<8x32xf32>
    %254 = vector.extract_strided_slice %247 {offsets = [0, 32], sizes = [8, 32], strides = [1, 1]} : vector<8x128xf32> to vector<8x32xf32>
    %255 = arith.negf %254 : vector<8x32xf32>
    %256 = math.exp %255 : vector<8x32xf32>
    %cst_108 = arith.constant 1.000000e+00 : f32
    %257 = vector.broadcast %cst_108 : f32 to vector<8x32xf32>
    %258 = arith.addf %257, %256 : vector<8x32xf32>
    %259 = arith.divf %257, %258 : vector<8x32xf32>
    %260 = vector.extract_strided_slice %247 {offsets = [0, 64], sizes = [8, 32], strides = [1, 1]} : vector<8x128xf32> to vector<8x32xf32>
    %261 = math.tanh %260 : vector<8x32xf32>
    %262 = vector.extract_strided_slice %247 {offsets = [0, 96], sizes = [8, 32], strides = [1, 1]} : vector<8x128xf32> to vector<8x32xf32>
    %263 = arith.negf %262 : vector<8x32xf32>
    %264 = math.exp %263 : vector<8x32xf32>
    %cst_109 = arith.constant 1.000000e+00 : f32
    %265 = vector.broadcast %cst_109 : f32 to vector<8x32xf32>
    %266 = arith.addf %265, %264 : vector<8x32xf32>
    %267 = arith.divf %265, %266 : vector<8x32xf32>
    %268 = arith.mulf %259, %244 : vector<8x32xf32>
    %269 = arith.mulf %253, %261 : vector<8x32xf32>
    %270 = arith.addf %268, %269 : vector<8x32xf32>
    %271 = math.tanh %270 : vector<8x32xf32>
    %272 = arith.mulf %267, %271 : vector<8x32xf32>
    %273 = vector.broadcast %238 : i32 to vector<8x1xi32>
    %274 = arith.cmpi slt, %273, %13 : vector<8x1xi32>
    %275 = vector.shape_cast %274 : vector<8x1xi1> to vector<8x1xi1>
    %276 = vector.broadcast %275 : vector<8x1xi1> to vector<8x32xi1>
    %277 = arith.select %276, %272, %243 : vector<8x32xi1>, vector<8x32xf32>
    %c0_110 = arith.constant 0 : index
    %c0_111 = arith.constant 0 : index
    %278 = vector.load %arg9[%c0_110, %c0_111] : memref<8x32xf32, #tpu.memory_space<vmem>>, vector<8x32xf32>
    tpu.vector_store %arg9[%c0_110, %c0_111], %277 {strides = array<i32>} : memref<8x32xf32, #tpu.memory_space<vmem>>, vector<8x32xf32>,
    %279 = vector.shape_cast %274 : vector<8x1xi1> to vector<8x1xi1>
    %280 = vector.broadcast %279 : vector<8x1xi1> to vector<8x32xi1>
    %281 = arith.select %280, %270, %244 : vector<8x32xi1>, vector<8x32xf32>
    %c0_112 = arith.constant 0 : index
    %c0_113 = arith.constant 0 : index
    %282 = vector.load %arg10[%c0_112, %c0_113] : memref<8x32xf32, #tpu.memory_space<vmem>>, vector<8x32xf32>
    tpu.vector_store %arg10[%c0_112, %c0_113], %281 {strides = array<i32>} : memref<8x32xf32, #tpu.memory_space<vmem>>, vector<8x32xf32>,
    %cst_114 = arith.constant 0.000000e+00 : f32
    %283 = vector.shape_cast %274 : vector<8x1xi1> to vector<8x1xi1>
    %284 = vector.broadcast %283 : vector<8x1xi1> to vector<8x32xi1>
    %285 = vector.broadcast %cst_114 : f32 to vector<8x32xf32>
    %286 = arith.select %284, %272, %285 : vector<8x32xi1>, vector<8x32xf32>
    %c0_115 = arith.constant 0 : index
    %287 = arith.index_cast %238 : i32 to index
    %c0_116 = arith.constant 0 : index
    %c0_117 = arith.constant 0 : index
    %288 = vector.load %arg6[%c0_115, %287, %c0_116, %c0_117] : memref<1x8x8x32xf32, #tpu.memory_space<vmem>>, vector<1x1x8x32xf32>
    %289 = vector.shape_cast %288 : vector<1x1x8x32xf32> to vector<8x32xf32>
    %290 = vector.shape_cast %286 : vector<8x32xf32> to vector<1x1x8x32xf32>
    tpu.vector_store %arg6[%c0_115, %287, %c0_116, %c0_117], %290 {strides = array<i32>} : memref<1x8x8x32xf32, #tpu.memory_space<vmem>>, vector<1x1x8x32xf32>,
    %c5_i32 = arith.constant 5 : i32
    %c0_i32_118 = arith.constant 0 : i32
    %291 = arith.cmpi eq, %arg0, %c0_i32_118 : i32
    %c7_i32_119 = arith.constant 7 : i32
    %292 = arith.subi %c7_i32_119, %c5_i32 : i32
    %293 = arith.select %291, %c5_i32, %292 : i32
    %c8_i32_120 = arith.constant 8 : i32
    %294 = arith.muli %293, %c8_i32_120 : i32
    %295 = tpu.assume_multiple %294, 8 : i32
    %296 = arith.index_cast %295 : i32 to index
    %c0_121 = arith.constant 0 : index
    %297 = vector.load %arg8[%296, %c0_121] : memref<64x128xf32, #tpu.memory_space<vmem>>, vector<8x128xf32>
    %c0_122 = arith.constant 0 : index
    %c0_123 = arith.constant 0 : index
    %298 = vector.load %arg9[%c0_122, %c0_123] : memref<8x32xf32, #tpu.memory_space<vmem>>, vector<8x32xf32>
    %c0_124 = arith.constant 0 : index
    %c0_125 = arith.constant 0 : index
    %299 = vector.load %arg10[%c0_124, %c0_125] : memref<8x32xf32, #tpu.memory_space<vmem>>, vector<8x32xf32>
    %300 = arith.truncf %298 : vector<8x32xf32> to vector<8x32xbf16>
    %cst_126 = arith.constant dense<0.000000e+00> : vector<8x128xf32>
    %301 = tpu.matmul %300, %15, %cst_126 {dimension_numbers = #tpu.dot_dimension_numbers<[1], [0], [0], [1], [0, 0, 1, 1], [], []>} : vector<8x32xbf16>, vector<32x128xbf16>, vector<8x128xf32> -> vector<8x128xf32>
    %302 = arith.addf %297, %301 : vector<8x128xf32>
    %303 = vector.extract_strided_slice %302 {offsets = [0, 0], sizes = [8, 32], strides = [1, 1]} : vector<8x128xf32> to vector<8x32xf32>
    %304 = arith.negf %303 : vector<8x32xf32>
    %305 = math.exp %304 : vector<8x32xf32>
    %cst_127 = arith.constant 1.000000e+00 : f32
    %306 = vector.broadcast %cst_127 : f32 to vector<8x32xf32>
    %307 = arith.addf %306, %305 : vector<8x32xf32>
    %308 = arith.divf %306, %307 : vector<8x32xf32>
    %309 = vector.extract_strided_slice %302 {offsets = [0, 32], sizes = [8, 32], strides = [1, 1]} : vector<8x128xf32> to vector<8x32xf32>
    %310 = arith.negf %309 : vector<8x32xf32>
    %311 = math.exp %310 : vector<8x32xf32>
    %cst_128 = arith.constant 1.000000e+00 : f32
    %312 = vector.broadcast %cst_128 : f32 to vector<8x32xf32>
    %313 = arith.addf %312, %311 : vector<8x32xf32>
    %314 = arith.divf %312, %313 : vector<8x32xf32>
    %315 = vector.extract_strided_slice %302 {offsets = [0, 64], sizes = [8, 32], strides = [1, 1]} : vector<8x128xf32> to vector<8x32xf32>
    %316 = math.tanh %315 : vector<8x32xf32>
    %317 = vector.extract_strided_slice %302 {offsets = [0, 96], sizes = [8, 32], strides = [1, 1]} : vector<8x128xf32> to vector<8x32xf32>
    %318 = arith.negf %317 : vector<8x32xf32>
    %319 = math.exp %318 : vector<8x32xf32>
    %cst_129 = arith.constant 1.000000e+00 : f32
    %320 = vector.broadcast %cst_129 : f32 to vector<8x32xf32>
    %321 = arith.addf %320, %319 : vector<8x32xf32>
    %322 = arith.divf %320, %321 : vector<8x32xf32>
    %323 = arith.mulf %314, %299 : vector<8x32xf32>
    %324 = arith.mulf %308, %316 : vector<8x32xf32>
    %325 = arith.addf %323, %324 : vector<8x32xf32>
    %326 = math.tanh %325 : vector<8x32xf32>
    %327 = arith.mulf %322, %326 : vector<8x32xf32>
    %328 = vector.broadcast %293 : i32 to vector<8x1xi32>
    %329 = arith.cmpi slt, %328, %13 : vector<8x1xi32>
    %330 = vector.shape_cast %329 : vector<8x1xi1> to vector<8x1xi1>
    %331 = vector.broadcast %330 : vector<8x1xi1> to vector<8x32xi1>
    %332 = arith.select %331, %327, %298 : vector<8x32xi1>, vector<8x32xf32>
    %c0_130 = arith.constant 0 : index
    %c0_131 = arith.constant 0 : index
    %333 = vector.load %arg9[%c0_130, %c0_131] : memref<8x32xf32, #tpu.memory_space<vmem>>, vector<8x32xf32>
    tpu.vector_store %arg9[%c0_130, %c0_131], %332 {strides = array<i32>} : memref<8x32xf32, #tpu.memory_space<vmem>>, vector<8x32xf32>,
    %334 = vector.shape_cast %329 : vector<8x1xi1> to vector<8x1xi1>
    %335 = vector.broadcast %334 : vector<8x1xi1> to vector<8x32xi1>
    %336 = arith.select %335, %325, %299 : vector<8x32xi1>, vector<8x32xf32>
    %c0_132 = arith.constant 0 : index
    %c0_133 = arith.constant 0 : index
    %337 = vector.load %arg10[%c0_132, %c0_133] : memref<8x32xf32, #tpu.memory_space<vmem>>, vector<8x32xf32>
    tpu.vector_store %arg10[%c0_132, %c0_133], %336 {strides = array<i32>} : memref<8x32xf32, #tpu.memory_space<vmem>>, vector<8x32xf32>,
    %cst_134 = arith.constant 0.000000e+00 : f32
    %338 = vector.shape_cast %329 : vector<8x1xi1> to vector<8x1xi1>
    %339 = vector.broadcast %338 : vector<8x1xi1> to vector<8x32xi1>
    %340 = vector.broadcast %cst_134 : f32 to vector<8x32xf32>
    %341 = arith.select %339, %327, %340 : vector<8x32xi1>, vector<8x32xf32>
    %c0_135 = arith.constant 0 : index
    %342 = arith.index_cast %293 : i32 to index
    %c0_136 = arith.constant 0 : index
    %c0_137 = arith.constant 0 : index
    %343 = vector.load %arg6[%c0_135, %342, %c0_136, %c0_137] : memref<1x8x8x32xf32, #tpu.memory_space<vmem>>, vector<1x1x8x32xf32>
    %344 = vector.shape_cast %343 : vector<1x1x8x32xf32> to vector<8x32xf32>
    %345 = vector.shape_cast %341 : vector<8x32xf32> to vector<1x1x8x32xf32>
    tpu.vector_store %arg6[%c0_135, %342, %c0_136, %c0_137], %345 {strides = array<i32>} : memref<1x8x8x32xf32, #tpu.memory_space<vmem>>, vector<1x1x8x32xf32>,
    %c6_i32 = arith.constant 6 : i32
    %c0_i32_138 = arith.constant 0 : i32
    %346 = arith.cmpi eq, %arg0, %c0_i32_138 : i32
    %c7_i32_139 = arith.constant 7 : i32
    %347 = arith.subi %c7_i32_139, %c6_i32 : i32
    %348 = arith.select %346, %c6_i32, %347 : i32
    %c8_i32_140 = arith.constant 8 : i32
    %349 = arith.muli %348, %c8_i32_140 : i32
    %350 = tpu.assume_multiple %349, 8 : i32
    %351 = arith.index_cast %350 : i32 to index
    %c0_141 = arith.constant 0 : index
    %352 = vector.load %arg8[%351, %c0_141] : memref<64x128xf32, #tpu.memory_space<vmem>>, vector<8x128xf32>
    %c0_142 = arith.constant 0 : index
    %c0_143 = arith.constant 0 : index
    %353 = vector.load %arg9[%c0_142, %c0_143] : memref<8x32xf32, #tpu.memory_space<vmem>>, vector<8x32xf32>
    %c0_144 = arith.constant 0 : index
    %c0_145 = arith.constant 0 : index
    %354 = vector.load %arg10[%c0_144, %c0_145] : memref<8x32xf32, #tpu.memory_space<vmem>>, vector<8x32xf32>
    %355 = arith.truncf %353 : vector<8x32xf32> to vector<8x32xbf16>
    %cst_146 = arith.constant dense<0.000000e+00> : vector<8x128xf32>
    %356 = tpu.matmul %355, %15, %cst_146 {dimension_numbers = #tpu.dot_dimension_numbers<[1], [0], [0], [1], [0, 0, 1, 1], [], []>} : vector<8x32xbf16>, vector<32x128xbf16>, vector<8x128xf32> -> vector<8x128xf32>
    %357 = arith.addf %352, %356 : vector<8x128xf32>
    %358 = vector.extract_strided_slice %357 {offsets = [0, 0], sizes = [8, 32], strides = [1, 1]} : vector<8x128xf32> to vector<8x32xf32>
    %359 = arith.negf %358 : vector<8x32xf32>
    %360 = math.exp %359 : vector<8x32xf32>
    %cst_147 = arith.constant 1.000000e+00 : f32
    %361 = vector.broadcast %cst_147 : f32 to vector<8x32xf32>
    %362 = arith.addf %361, %360 : vector<8x32xf32>
    %363 = arith.divf %361, %362 : vector<8x32xf32>
    %364 = vector.extract_strided_slice %357 {offsets = [0, 32], sizes = [8, 32], strides = [1, 1]} : vector<8x128xf32> to vector<8x32xf32>
    %365 = arith.negf %364 : vector<8x32xf32>
    %366 = math.exp %365 : vector<8x32xf32>
    %cst_148 = arith.constant 1.000000e+00 : f32
    %367 = vector.broadcast %cst_148 : f32 to vector<8x32xf32>
    %368 = arith.addf %367, %366 : vector<8x32xf32>
    %369 = arith.divf %367, %368 : vector<8x32xf32>
    %370 = vector.extract_strided_slice %357 {offsets = [0, 64], sizes = [8, 32], strides = [1, 1]} : vector<8x128xf32> to vector<8x32xf32>
    %371 = math.tanh %370 : vector<8x32xf32>
    %372 = vector.extract_strided_slice %357 {offsets = [0, 96], sizes = [8, 32], strides = [1, 1]} : vector<8x128xf32> to vector<8x32xf32>
    %373 = arith.negf %372 : vector<8x32xf32>
    %374 = math.exp %373 : vector<8x32xf32>
    %cst_149 = arith.constant 1.000000e+00 : f32
    %375 = vector.broadcast %cst_149 : f32 to vector<8x32xf32>
    %376 = arith.addf %375, %374 : vector<8x32xf32>
    %377 = arith.divf %375, %376 : vector<8x32xf32>
    %378 = arith.mulf %369, %354 : vector<8x32xf32>
    %379 = arith.mulf %363, %371 : vector<8x32xf32>
    %380 = arith.addf %378, %379 : vector<8x32xf32>
    %381 = math.tanh %380 : vector<8x32xf32>
    %382 = arith.mulf %377, %381 : vector<8x32xf32>
    %383 = vector.broadcast %348 : i32 to vector<8x1xi32>
    %384 = arith.cmpi slt, %383, %13 : vector<8x1xi32>
    %385 = vector.shape_cast %384 : vector<8x1xi1> to vector<8x1xi1>
    %386 = vector.broadcast %385 : vector<8x1xi1> to vector<8x32xi1>
    %387 = arith.select %386, %382, %353 : vector<8x32xi1>, vector<8x32xf32>
    %c0_150 = arith.constant 0 : index
    %c0_151 = arith.constant 0 : index
    %388 = vector.load %arg9[%c0_150, %c0_151] : memref<8x32xf32, #tpu.memory_space<vmem>>, vector<8x32xf32>
    tpu.vector_store %arg9[%c0_150, %c0_151], %387 {strides = array<i32>} : memref<8x32xf32, #tpu.memory_space<vmem>>, vector<8x32xf32>,
    %389 = vector.shape_cast %384 : vector<8x1xi1> to vector<8x1xi1>
    %390 = vector.broadcast %389 : vector<8x1xi1> to vector<8x32xi1>
    %391 = arith.select %390, %380, %354 : vector<8x32xi1>, vector<8x32xf32>
    %c0_152 = arith.constant 0 : index
    %c0_153 = arith.constant 0 : index
    %392 = vector.load %arg10[%c0_152, %c0_153] : memref<8x32xf32, #tpu.memory_space<vmem>>, vector<8x32xf32>
    tpu.vector_store %arg10[%c0_152, %c0_153], %391 {strides = array<i32>} : memref<8x32xf32, #tpu.memory_space<vmem>>, vector<8x32xf32>,
    %cst_154 = arith.constant 0.000000e+00 : f32
    %393 = vector.shape_cast %384 : vector<8x1xi1> to vector<8x1xi1>
    %394 = vector.broadcast %393 : vector<8x1xi1> to vector<8x32xi1>
    %395 = vector.broadcast %cst_154 : f32 to vector<8x32xf32>
    %396 = arith.select %394, %382, %395 : vector<8x32xi1>, vector<8x32xf32>
    %c0_155 = arith.constant 0 : index
    %397 = arith.index_cast %348 : i32 to index
    %c0_156 = arith.constant 0 : index
    %c0_157 = arith.constant 0 : index
    %398 = vector.load %arg6[%c0_155, %397, %c0_156, %c0_157] : memref<1x8x8x32xf32, #tpu.memory_space<vmem>>, vector<1x1x8x32xf32>
    %399 = vector.shape_cast %398 : vector<1x1x8x32xf32> to vector<8x32xf32>
    %400 = vector.shape_cast %396 : vector<8x32xf32> to vector<1x1x8x32xf32>
    tpu.vector_store %arg6[%c0_155, %397, %c0_156, %c0_157], %400 {strides = array<i32>} : memref<1x8x8x32xf32, #tpu.memory_space<vmem>>, vector<1x1x8x32xf32>,
    %c7_i32_158 = arith.constant 7 : i32
    %c0_i32_159 = arith.constant 0 : i32
    %401 = arith.cmpi eq, %arg0, %c0_i32_159 : i32
    %c7_i32_160 = arith.constant 7 : i32
    %402 = arith.subi %c7_i32_160, %c7_i32_158 : i32
    %403 = arith.select %401, %c7_i32_158, %402 : i32
    %c8_i32_161 = arith.constant 8 : i32
    %404 = arith.muli %403, %c8_i32_161 : i32
    %405 = tpu.assume_multiple %404, 8 : i32
    %406 = arith.index_cast %405 : i32 to index
    %c0_162 = arith.constant 0 : index
    %407 = vector.load %arg8[%406, %c0_162] : memref<64x128xf32, #tpu.memory_space<vmem>>, vector<8x128xf32>
    %c0_163 = arith.constant 0 : index
    %c0_164 = arith.constant 0 : index
    %408 = vector.load %arg9[%c0_163, %c0_164] : memref<8x32xf32, #tpu.memory_space<vmem>>, vector<8x32xf32>
    %c0_165 = arith.constant 0 : index
    %c0_166 = arith.constant 0 : index
    %409 = vector.load %arg10[%c0_165, %c0_166] : memref<8x32xf32, #tpu.memory_space<vmem>>, vector<8x32xf32>
    %410 = arith.truncf %408 : vector<8x32xf32> to vector<8x32xbf16>
    %cst_167 = arith.constant dense<0.000000e+00> : vector<8x128xf32>
    %411 = tpu.matmul %410, %15, %cst_167 {dimension_numbers = #tpu.dot_dimension_numbers<[1], [0], [0], [1], [0, 0, 1, 1], [], []>} : vector<8x32xbf16>, vector<32x128xbf16>, vector<8x128xf32> -> vector<8x128xf32>
    %412 = arith.addf %407, %411 : vector<8x128xf32>
    %413 = vector.extract_strided_slice %412 {offsets = [0, 0], sizes = [8, 32], strides = [1, 1]} : vector<8x128xf32> to vector<8x32xf32>
    %414 = arith.negf %413 : vector<8x32xf32>
    %415 = math.exp %414 : vector<8x32xf32>
    %cst_168 = arith.constant 1.000000e+00 : f32
    %416 = vector.broadcast %cst_168 : f32 to vector<8x32xf32>
    %417 = arith.addf %416, %415 : vector<8x32xf32>
    %418 = arith.divf %416, %417 : vector<8x32xf32>
    %419 = vector.extract_strided_slice %412 {offsets = [0, 32], sizes = [8, 32], strides = [1, 1]} : vector<8x128xf32> to vector<8x32xf32>
    %420 = arith.negf %419 : vector<8x32xf32>
    %421 = math.exp %420 : vector<8x32xf32>
    %cst_169 = arith.constant 1.000000e+00 : f32
    %422 = vector.broadcast %cst_169 : f32 to vector<8x32xf32>
    %423 = arith.addf %422, %421 : vector<8x32xf32>
    %424 = arith.divf %422, %423 : vector<8x32xf32>
    %425 = vector.extract_strided_slice %412 {offsets = [0, 64], sizes = [8, 32], strides = [1, 1]} : vector<8x128xf32> to vector<8x32xf32>
    %426 = math.tanh %425 : vector<8x32xf32>
    %427 = vector.extract_strided_slice %412 {offsets = [0, 96], sizes = [8, 32], strides = [1, 1]} : vector<8x128xf32> to vector<8x32xf32>
    %428 = arith.negf %427 : vector<8x32xf32>
    %429 = math.exp %428 : vector<8x32xf32>
    %cst_170 = arith.constant 1.000000e+00 : f32
    %430 = vector.broadcast %cst_170 : f32 to vector<8x32xf32>
    %431 = arith.addf %430, %429 : vector<8x32xf32>
    %432 = arith.divf %430, %431 : vector<8x32xf32>
    %433 = arith.mulf %424, %409 : vector<8x32xf32>
    %434 = arith.mulf %418, %426 : vector<8x32xf32>
    %435 = arith.addf %433, %434 : vector<8x32xf32>
    %436 = math.tanh %435 : vector<8x32xf32>
    %437 = arith.mulf %432, %436 : vector<8x32xf32>
    %438 = vector.broadcast %403 : i32 to vector<8x1xi32>
    %439 = arith.cmpi slt, %438, %13 : vector<8x1xi32>
    %440 = vector.shape_cast %439 : vector<8x1xi1> to vector<8x1xi1>
    %441 = vector.broadcast %440 : vector<8x1xi1> to vector<8x32xi1>
    %442 = arith.select %441, %437, %408 : vector<8x32xi1>, vector<8x32xf32>
    %c0_171 = arith.constant 0 : index
    %c0_172 = arith.constant 0 : index
    %443 = vector.load %arg9[%c0_171, %c0_172] : memref<8x32xf32, #tpu.memory_space<vmem>>, vector<8x32xf32>
    tpu.vector_store %arg9[%c0_171, %c0_172], %442 {strides = array<i32>} : memref<8x32xf32, #tpu.memory_space<vmem>>, vector<8x32xf32>,
    %444 = vector.shape_cast %439 : vector<8x1xi1> to vector<8x1xi1>
    %445 = vector.broadcast %444 : vector<8x1xi1> to vector<8x32xi1>
    %446 = arith.select %445, %435, %409 : vector<8x32xi1>, vector<8x32xf32>
    %c0_173 = arith.constant 0 : index
    %c0_174 = arith.constant 0 : index
    %447 = vector.load %arg10[%c0_173, %c0_174] : memref<8x32xf32, #tpu.memory_space<vmem>>, vector<8x32xf32>
    tpu.vector_store %arg10[%c0_173, %c0_174], %446 {strides = array<i32>} : memref<8x32xf32, #tpu.memory_space<vmem>>, vector<8x32xf32>,
    %cst_175 = arith.constant 0.000000e+00 : f32
    %448 = vector.shape_cast %439 : vector<8x1xi1> to vector<8x1xi1>
    %449 = vector.broadcast %448 : vector<8x1xi1> to vector<8x32xi1>
    %450 = vector.broadcast %cst_175 : f32 to vector<8x32xf32>
    %451 = arith.select %449, %437, %450 : vector<8x32xi1>, vector<8x32xf32>
    %c0_176 = arith.constant 0 : index
    %452 = arith.index_cast %403 : i32 to index
    %c0_177 = arith.constant 0 : index
    %c0_178 = arith.constant 0 : index
    %453 = vector.load %arg6[%c0_176, %452, %c0_177, %c0_178] : memref<1x8x8x32xf32, #tpu.memory_space<vmem>>, vector<1x1x8x32xf32>
    %454 = vector.shape_cast %453 : vector<1x1x8x32xf32> to vector<8x32xf32>
    %455 = vector.shape_cast %451 : vector<8x32xf32> to vector<1x1x8x32xf32>
    tpu.vector_store %arg6[%c0_176, %452, %c0_177, %c0_178], %455 {strides = array<i32>} : memref<1x8x8x32xf32, #tpu.memory_space<vmem>>, vector<1x1x8x32xf32>,
    %c8_i32_179 = arith.constant 8 : i32
    %c0_180 = arith.constant 0 : index
    %c0_181 = arith.constant 0 : index
    %456 = vector.load %arg9[%c0_180, %c0_181] : memref<8x32xf32, #tpu.memory_space<vmem>>, vector<8x32xf32>
    %c0_182 = arith.constant 0 : index
    %c0_183 = arith.constant 0 : index
    %c0_184 = arith.constant 0 : index
    %457 = vector.load %arg7[%c0_182, %c0_183, %c0_184] : memref<1x8x32xf32, #tpu.memory_space<vmem>>, vector<1x8x32xf32>
    %458 = vector.shape_cast %457 : vector<1x8x32xf32> to vector<8x32xf32>
    %459 = vector.shape_cast %456 : vector<8x32xf32> to vector<1x8x32xf32>
    tpu.vector_store %arg7[%c0_182, %c0_183, %c0_184], %459 {strides = array<i32>} : memref<1x8x32xf32, #tpu.memory_space<vmem>>, vector<1x8x32xf32>,
    return
  }
  func.func @transform_0(%arg0: i32) -> (i32, i32) {
    %c0_i32 = arith.constant 0 : i32
    %c0_i32_0 = arith.constant 0 : i32
    %c0_i32_1 = arith.constant 0 : i32
    return %c0_i32, %c0_i32_0 : i32, i32
  }
  func.func @transform_1(%arg0: i32) -> (i32, i32) {
    %c0_i32 = arith.constant 0 : i32
    %c0_i32_0 = arith.constant 0 : i32
    %c0_i32_1 = arith.constant 0 : i32
    return %c0_i32, %c0_i32_0 : i32, i32
  }
  func.func @transform_2(%arg0: i32) -> (i32, i32, i32) {
    %c0_i32 = arith.constant 0 : i32
    %c0_i32_0 = arith.constant 0 : i32
    %c0_i32_1 = arith.constant 0 : i32
    return %arg0, %c0_i32, %c0_i32_0 : i32, i32, i32
  }
  func.func @transform_3(%arg0: i32) -> (i32, i32, i32) {
    %c0_i32 = arith.constant 0 : i32
    %c0_i32_0 = arith.constant 0 : i32
    %c0_i32_1 = arith.constant 0 : i32
    return %arg0, %c0_i32, %c0_i32_0 : i32, i32, i32
  }
  func.func @transform_4(%arg0: i32) -> (i32, i32, i32) {
    %c0_i32 = arith.constant 0 : i32
    %c0_i32_0 = arith.constant 0 : i32
    %c0_i32_1 = arith.constant 0 : i32
    return %arg0, %c0_i32, %c0_i32_0 : i32, i32, i32
  }
  func.func @transform_5(%arg0: i32) -> (i32, i32, i32, i32) {
    %c0_i32 = arith.constant 0 : i32
    %c0_i32_0 = arith.constant 0 : i32
    %c0_i32_1 = arith.constant 0 : i32
    %c0_i32_2 = arith.constant 0 : i32
    return %arg0, %c0_i32, %c0_i32_0, %c0_i32_1 : i32, i32, i32, i32
  }
  func.func @transform_6(%arg0: i32) -> (i32, i32, i32) {
    %c0_i32 = arith.constant 0 : i32
    %c0_i32_0 = arith.constant 0 : i32
    %c0_i32_1 = arith.constant 0 : i32
    return %arg0, %c0_i32, %c0_i32_0 : i32, i32, i32
  }
}

</mosaic_0001>

<llo_original>
// kernel: tpu_custom_call.1
$region0: #{tpu_custom_call.1}
  #allocation0 [shape = 'u32[]', space=smem, size = 0x4, offset = 0x4, fixed_abs, tag = 'smem constant byte address 0x4 - core index']
  #allocation1 [shape = 'u32[144,128]{1,0:T(1,128)}', space=vmem, size = 0x12000, scoped, tag = 'internal scratch']
  #allocation2 [shape = 'f32[64,128]{1,0:T(8,128)}', space=vmem, size = 0x8000, scoped, tag = 'scratch operand']
  #allocation3 [shape = 'f32[8,32]{1,0:T(8,128)}', space=vmem, size = 0x1000, scoped, tag = 'scratch operand']
  #allocation4 [shape = 'f32[8,32]{1,0:T(8,128)}', space=vmem, size = 0x1000, scoped, tag = 'scratch operand']
  %s0 = inlined_call_operand.vmem [shape: s32[8,1], index: 0, kind: input, shape index: {}]
  %s1 = inlined_call_operand.vmem [shape: bf16[64,16], index: 1, kind: input, shape index: {}]
  %s2 = inlined_call_operand.vmem [shape: bf16[2,16,128], index: 2, kind: input, shape index: {}]
  %s3 = inlined_call_operand.vmem [shape: bf16[2,32,128], index: 3, kind: input, shape index: {}]
  %s4 = inlined_call_operand.vmem [shape: f32[2,1,128], index: 4, kind: input, shape index: {}]
  %s5 = inlined_call_operand.hbm [shape: f32[2,8,8,32], index: 5, kind: output, shape index: {0}]
  %s6 = inlined_call_operand.hbm [shape: f32[2,8,32], index: 6, kind: output, shape index: {1}]
  %7 = xla_tuple %s5, %s6
  %s8 = sld [smem:[#allocation0]]
  $region61: #{tpu_custom_call.1} parent=0
    _
  %s10 = ssub.s32 1, %s8
  %s11 = scalar_select 0, %s10, %s8
  $region1: #{tpu_custom_call.1} parent=0
    #allocation5 [shape = 'u8[65536]{0}', space=vmem, size = 0x10000, scoped, tag = 'output window, operand 0']
    #allocation6 [shape = 's32[2]{0}', space=sflag, size = 0x8, scoped, tag = 'scoped memory for tpu_custom_call.1']
    #allocation7 [shape = 'u8[8192]{0}', space=vmem, size = 0x2000, scoped, tag = 'output window, operand 1']
    #allocation8 [shape = 's32[2]{0}', space=sflag, size = 0x8, scoped, tag = 'scoped memory for tpu_custom_call.1']
    %12 = vsyncpa [#allocation6], 0
    %s13 = scalar_lea.sflag [#allocation6], 1
    %14 = vsyncpa %s13, 0
    %15 = vsyncpa [#allocation8], 0
    %s16 = scalar_lea.sflag [#allocation8], 1
    %17 = vsyncpa %s16, 0
    loop: start=0, step=1, limit=4
    $region2: #{tpu_custom_call.1} parent=1 // loop_pre_header
      _
    $region3: #{tpu_custom_call.1} parent=1 // loop_header
      %s19 = sphi 0, %s23
      %p20 = scmp.ge.s32.totalorder %s19, 4
      %s27 = sphi 0, %s27
      %s29 = sphi 0, %s27
      %s30 = sphi 0, %s29
      %s44 = sphi 0, %s30
      %s48 = sphi 0, %s48
      %s50 = sphi 0, %s48
      %s51 = sphi 0, %s50
      %s65 = sphi 0, %s51
      %s71 = sphi 0, %s73
      %s74 = sphi 0, %s71
      %s75 = sphi 0, %s74
      %s91 = sphi 0, %s75
      %s97 = sphi 0, %s99
      %s100 = sphi 0, %s97
      %s101 = sphi 0, %s100
      %s117 = sphi 0, %s101
      %s123 = sphi 0, %s125
      %s126 = sphi 0, %s123
      %s127 = sphi 0, %s126
      %s143 = sphi 0, %s127
      %s149 = sphi 0, %s151
      %s152 = sphi 0, %s149
      %s153 = sphi 0, %s152
      %s169 = sphi 0, %s153
      %s175 = sphi 0, %s177
      %s178 = sphi 0, %s175
      %s179 = sphi 0, %s178
      %s195 = sphi 0, %s179
    $region4: #{tpu_custom_call.1} parent=1 // loop_header_branch
      %22 = sbr.rel (%p20) target = $region8
    $region5: #{tpu_custom_call.1} parent=1 // loop_body
      %s24 = ssub.s32 %s19, 1
      %s25 = ssub.s32 %s19, 2
      %s26 = sadd.s32 %s19, 1
      %s28 = sadd.s32 %s27, 1
      %p31 = scmp.eq.s32.totalorder %s19, 1
      %p32 = scmp.ne.s32.totalorder %s27, %s29
      %p33 = scmp.eq.s32.totalorder %s19, 0
      %p34 = por %p32, %p33
      %p35 = scmp.ne.s32.totalorder %s27, %s29
      %p36 = scmp.eq.s32.totalorder %s24, 1
      %p37 = por %p35, %p36
      %p38 = scmp.ne.s32.totalorder %s29, %s30
      %p39 = scmp.eq.s32.totalorder %s24, 0
      %p40 = por %p38, %p39
      %p41 = scmp.ne.s32.totalorder %s29, %s30
      %p42 = scmp.eq.s32.totalorder %s25, 1
      %p43 = por %p41, %p42
      %p45 = scmp.ne.s32.totalorder %s30, %s44
      %p46 = scmp.eq.s32.totalorder %s25, 0
      %p47 = por %p45, %p46
      %s49 = sadd.s32 %s48, 1
      %p52 = scmp.eq.s32.totalorder %s19, 1
      %p53 = scmp.ne.s32.totalorder %s48, %s50
      %p54 = scmp.eq.s32.totalorder %s19, 0
      %p55 = por %p53, %p54
      %p56 = scmp.ne.s32.totalorder %s48, %s50
      %p57 = scmp.eq.s32.totalorder %s24, 1
      %p58 = por %p56, %p57
      %p59 = scmp.ne.s32.totalorder %s50, %s51
      %p60 = scmp.eq.s32.totalorder %s24, 0
      %p61 = por %p59, %p60
      %p62 = scmp.ne.s32.totalorder %s50, %s51
      %p63 = scmp.eq.s32.totalorder %s25, 1
      %p64 = por %p62, %p63
      %p66 = scmp.ne.s32.totalorder %s51, %s65
      %p67 = scmp.eq.s32.totalorder %s25, 0
      %p68 = por %p66, %p67
      %s69 = ssub.s32 %s19, %s26
      %p70 = scmp.eq.s32.totalorder %s69, 0
      %s72 = sadd.s32 %s71, 1
      %s73 = scalar_select %p70, %s71, %s72
      %p76 = pneg %p70
      %p77 = scmp.eq.s32.totalorder %s19, 1
      %p78 = por %p76, %p77
      %p79 = scmp.ne.s32.totalorder %s71, %s74
      %p80 = scmp.eq.s32.totalorder %s19, 0
      %p81 = por %p79, %p80
      %p82 = scmp.ne.s32.totalorder %s71, %s74
      %p83 = scmp.eq.s32.totalorder %s24, 1
      %p84 = por %p82, %p83
      %p85 = scmp.ne.s32.totalorder %s74, %s75
      %p86 = scmp.eq.s32.totalorder %s24, 0
      %p87 = por %p85, %p86
      %p88 = scmp.ne.s32.totalorder %s74, %s75
      %p89 = scmp.eq.s32.totalorder %s25, 1
      %p90 = por %p88, %p89
      %p92 = scmp.ne.s32.totalorder %s75, %s91
      %p93 = scmp.eq.s32.totalorder %s25, 0
      %p94 = por %p92, %p93
      %s95 = ssub.s32 %s19, %s26
      %p96 = scmp.eq.s32.totalorder %s95, 0
      %s98 = sadd.s32 %s97, 1
      %s99 = scalar_select %p96, %s97, %s98
      %p102 = pneg %p96
      %p103 = scmp.eq.s32.totalorder %s19, 1
      %p104 = por %p102, %p103
      %p105 = scmp.ne.s32.totalorder %s97, %s100
      %p106 = scmp.eq.s32.totalorder %s19, 0
      %p107 = por %p105, %p106
      %p108 = scmp.ne.s32.totalorder %s97, %s100
      %p109 = scmp.eq.s32.totalorder %s24, 1
      %p110 = por %p108, %p109
      %p111 = scmp.ne.s32.totalorder %s100, %s101
      %p112 = scmp.eq.s32.totalorder %s24, 0
      %p113 = por %p111, %p112
      %p114 = scmp.ne.s32.totalorder %s100, %s101
      %p115 = scmp.eq.s32.totalorder %s25, 1
      %p116 = por %p114, %p115
      %p118 = scmp.ne.s32.totalorder %s101, %s117
      %p119 = scmp.eq.s32.totalorder %s25, 0
      %p120 = por %p118, %p119
      %s121 = ssub.s32 %s19, %s26
      %p122 = scmp.eq.s32.totalorder %s121, 0
      %s124 = sadd.s32 %s123, 1
      %s125 = scalar_select %p122, %s123, %s124
      %p128 = pneg %p122
      %p129 = scmp.eq.s32.totalorder %s19, 1
      %p130 = por %p128, %p129
      %p131 = scmp.ne.s32.totalorder %s123, %s126
      %p132 = scmp.eq.s32.totalorder %s19, 0
      %p133 = por %p131, %p132
      %p134 = scmp.ne.s32.totalorder %s123, %s126
      %p135 = scmp.eq.s32.totalorder %s24, 1
      %p136 = por %p134, %p135
      %p137 = scmp.ne.s32.totalorder %s126, %s127
      %p138 = scmp.eq.s32.totalorder %s24, 0
      %p139 = por %p137, %p138
      %p140 = scmp.ne.s32.totalorder %s126, %s127
      %p141 = scmp.eq.s32.totalorder %s25, 1
      %p142 = por %p140, %p141
      %p144 = scmp.ne.s32.totalorder %s127, %s143
      %p145 = scmp.eq.s32.totalorder %s25, 0
      %p146 = por %p144, %p145
      %s147 = ssub.s32 %s19, %s26
      %p148 = scmp.eq.s32.totalorder %s147, 0
      %s150 = sadd.s32 %s149, 1
      %s151 = scalar_select %p148, %s149, %s150
      %p154 = pneg %p148
      %p155 = scmp.eq.s32.totalorder %s19, 1
      %p156 = por %p154, %p155
      %p157 = scmp.ne.s32.totalorder %s149, %s152
      %p158 = scmp.eq.s32.totalorder %s19, 0
      %p159 = por %p157, %p158
      %p160 = scmp.ne.s32.totalorder %s149, %s152
      %p161 = scmp.eq.s32.totalorder %s24, 1
      %p162 = por %p160, %p161
      %p163 = scmp.ne.s32.totalorder %s152, %s153
      %p164 = scmp.eq.s32.totalorder %s24, 0
      %p165 = por %p163, %p164
      %p166 = scmp.ne.s32.totalorder %s152, %s153
      %p167 = scmp.eq.s32.totalorder %s25, 1
      %p168 = por %p166, %p167
      %p170 = scmp.ne.s32.totalorder %s153, %s169
      %p171 = scmp.eq.s32.totalorder %s25, 0
      %p172 = por %p170, %p171
      %s173 = ssub.s32 %s19, %s26
      %p174 = scmp.eq.s32.totalorder %s173, 0
      %s176 = sadd.s32 %s175, 1
      %s177 = scalar_select %p174, %s175, %s176
      %p180 = pneg %p174
      %p181 = scmp.eq.s32.totalorder %s19, 1
      %p182 = por %p180, %p181
      %p183 = scmp.ne.s32.totalorder %s175, %s178
      %p184 = scmp.eq.s32.totalorder %s19, 0
      %p185 = por %p183, %p184
      %p186 = scmp.ne.s32.totalorder %s175, %s178
      %p187 = scmp.eq.s32.totalorder %s24, 1
      %p188 = por %p186, %p187
      %p189 = scmp.ne.s32.totalorder %s178, %s179
      %p190 = scmp.eq.s32.totalorder %s24, 0
      %p191 = por %p189, %p190
      %p192 = scmp.ne.s32.totalorder %s178, %s179
      %p193 = scmp.eq.s32.totalorder %s25, 1
      %p194 = por %p192, %p193
      %p196 = scmp.ne.s32.totalorder %s179, %s195
      %p197 = scmp.eq.s32.totalorder %s25, 0
      %p198 = por %p196, %p197
      %p199 = scmp.le.s32.totalorder 1, %s19
      %p200 = scmp.lt.s32.totalorder %s19, 3
      %p201 = pnand %p199, %p200
      %p202 = pneg %p201
      // Predicated region
      $region9: #{tpu_custom_call.1} parent=5 // pred_check
        _
      $region10: #{tpu_custom_call.1} parent=5 // pred_check_branch
        %204 = sbr.rel (%p201) target = $region12
      $region11: #{tpu_custom_call.1} parent=5 // pred_region
        %s205 = ssub.s32 %s19, 1
        // Predicated region
        $region13: #{tpu_custom_call.1} parent=11 // pred_check
          %p206 = pneg %p40
        $region14: #{tpu_custom_call.1} parent=11 // pred_check_branch
          %208 = sbr.rel (%p206) target = $region16
        $region15: #{tpu_custom_call.1} parent=11 // pred_region
          _
        $region16: #{tpu_custom_call.1} parent=11 // pred_fallthru
          _
        // Predicated region
        $region17: #{tpu_custom_call.1} parent=11 // pred_check
          %p209 = pneg %p61
        $region18: #{tpu_custom_call.1} parent=11 // pred_check_branch
          %211 = sbr.rel (%p209) target = $region20
        $region19: #{tpu_custom_call.1} parent=11 // pred_region
          _
        $region20: #{tpu_custom_call.1} parent=11 // pred_fallthru
          _
      $region12: #{tpu_custom_call.1} parent=5 // pred_fallthru
        _
      %p212 = scmp.lt.s32.totalorder %s19, 2
      // Predicated region
      $region21: #{tpu_custom_call.1} parent=5 // pred_check
        %p213 = pneg %p212
      $region22: #{tpu_custom_call.1} parent=5 // pred_check_branch
        %215 = sbr.rel (%p213) target = $region24
      $region23: #{tpu_custom_call.1} parent=5 // pred_region
        // Predicated region
        $region25: #{tpu_custom_call.1} parent=23 // pred_check
          %p216 = pneg %p81
        $region26: #{tpu_custom_call.1} parent=23 // pred_check_branch
          %218 = sbr.rel (%p216) target = $region28
        $region27: #{tpu_custom_call.1} parent=23 // pred_region
          %p219 = scmp.lt.s32.totalorder %s19, 1
          %s220 = scalar_select %p219, %s19, 1
          %s221 = smul.addr %s220, 2
          %s222 = smul.addr %s221, 4
          %s223 = scalar_lea.vmem %s2, %s222
        $region28: #{tpu_custom_call.1} parent=23 // pred_fallthru
          _
        // Predicated region
        $region29: #{tpu_custom_call.1} parent=23 // pred_check
          %p224 = pneg %p107
        $region30: #{tpu_custom_call.1} parent=23 // pred_check_branch
          %226 = sbr.rel (%p224) target = $region32
        $region31: #{tpu_custom_call.1} parent=23 // pred_region
          %p227 = scmp.lt.s32.totalorder %s19, 1
          %s228 = scalar_select %p227, %s19, 1
          %s229 = smul.addr %s228, 4
          %s230 = smul.addr %s229, 4
          %s231 = scalar_lea.vmem %s3, %s230
        $region32: #{tpu_custom_call.1} parent=23 // pred_fallthru
          _
        // Predicated region
        $region33: #{tpu_custom_call.1} parent=23 // pred_check
          %p232 = pneg %p133
        $region34: #{tpu_custom_call.1} parent=23 // pred_check_branch
          %234 = sbr.rel (%p232) target = $region36
        $region35: #{tpu_custom_call.1} parent=23 // pred_region
          %p235 = scmp.lt.s32.totalorder %s19, 1
          %s236 = scalar_select %p235, %s19, 1
          %s237 = scalar_lea.vmem %s4, %s236
        $region36: #{tpu_custom_call.1} parent=23 // pred_fallthru
          _
      $region24: #{tpu_custom_call.1} parent=5 // pred_fallthru
        _
      %p238 = scmp.le.s32.totalorder 1, %s19
      %p239 = scmp.lt.s32.totalorder %s19, 3
      %p240 = pnand %p238, %p239
      %p241 = pneg %p240
      // Predicated region
      $region37: #{tpu_custom_call.1} parent=5 // pred_check
        _
      $region38: #{tpu_custom_call.1} parent=5 // pred_check_branch
        %243 = sbr.rel (%p240) target = $region40
      $region39: #{tpu_custom_call.1} parent=5 // pred_region
        %s244 = ssub.s32 %s19, 1
        %p245 = pneg %p40
        %p246 = pneg %p37
        %p247 = pneg %p61
        %p248 = pneg %p58
        %p249 = scmp.lt.s32.totalorder %s24, 1
        %s250 = scalar_select %p249, %s24, 1
        %s251 = smul.addr %s250, 2
        %s252 = smul.addr %s251, 4
        %s253 = scalar_lea.vmem %s2, %s252
        %p254 = pneg %p87
        %p255 = pneg %p84
        %p256 = scmp.lt.s32.totalorder %s24, 1
        %s257 = scalar_select %p256, %s24, 1
        %s258 = smul.addr %s257, 4
        %s259 = smul.addr %s258, 4
        %s260 = scalar_lea.vmem %s3, %s259
        %p261 = pneg %p113
        %p262 = pneg %p110
        %p263 = scmp.lt.s32.totalorder %s24, 1
        %s264 = scalar_select %p263, %s24, 1
        %s265 = scalar_lea.vmem %s4, %s264
        %p266 = pneg %p139
        %p267 = pneg %p136
        %p268 = pneg %p165
        %p269 = pneg %p162
        %s270 = sand.u32 %s152, 1
        %s271 = scalar_lea.sflag [#allocation6], %s270
        %s272 = sand.u32 %s152, 1
        %s273 = smul.addr %s272, 64
        %s274 = scalar_lea.vmem [#allocation5], %s273
        %p275 = pneg %p191
        %p276 = pneg %p188
        %s277 = sand.u32 %s178, 1
        %s278 = scalar_lea.sflag [#allocation8], %s277
        %s279 = sand.u32 %s178, 1
        %s280 = smul.addr %s279, 8
        %s281 = scalar_lea.vmem [#allocation7], %s280
        %p282 = scmp.lt.s32.totalorder %s24, 1
        %s283 = scalar_select %p282, %s24, 1
        %s284 = smul.addr %s283, 2
        %s285 = smul.addr %s284, 4
        %s286 = scalar_lea.vmem %s2, %s285
        %p287 = scmp.lt.s32.totalorder %s24, 1
        %s288 = scalar_select %p287, %s24, 1
        %s289 = smul.addr %s288, 4
        %s290 = smul.addr %s289, 4
        %s291 = scalar_lea.vmem %s3, %s290
        %p292 = scmp.lt.s32.totalorder %s24, 1
        %s293 = scalar_select %p292, %s24, 1
        %s294 = scalar_lea.vmem %s4, %s293
        %v296 = vld [vmem:[%s1] sm:$0xf]
        %v297 = vld [vmem:[%s1 + $0x4] sm:$0xf]
        %v298 = vld [vmem:[%s1 + $0x8] sm:$0xf]
        %v299 = vld [vmem:[%s1 + $0xc] sm:$0xf]
        %v300 = vld [vmem:[%s1 + $0x10] sm:$0xf]
        %v301 = vld [vmem:[%s1 + $0x14] sm:$0xf]
        %v302 = vld [vmem:[%s1 + $0x18] sm:$0xf]
        %v303 = vld [vmem:[%s1 + $0x1c] sm:$0xf]
        %v304 = vld [vmem:[%s286] sm:$0xf]
        %v305 = vld [vmem:[%s286 + $0x4] sm:$0xf]
        %v306 = vld [vmem:[%s294] sm:$0x1]
        %v308 = vlaneseq
        %v309 = vshrl.u32 %v308, 7
        %v310 = vsub.s32 0, %v309
        %v311 = vrot.slane %v306, %v310
        %v321 = vunpack.c.l.b16 %v296
        %v322 = vunpack.c.l.b16 %v297
        %v323 = vunpack.c.l.b16 %v298
        %v324 = vunpack.c.l.b16 %v299
        %v325 = vunpack.c.l.b16 %v300
        %v326 = vunpack.c.l.b16 %v301
        %v327 = vunpack.c.l.b16 %v302
        %v328 = vunpack.c.l.b16 %v303
        %v329 = vpack.c.b16 %v322, %v321
        %v330 = vpack.c.b16 %v324, %v323
        %v331 = vpack.c.b16 %v326, %v325
        %v332 = vpack.c.b16 %v328, %v327
        %v335 = vunpack.c.l.b16 %v304
        %v336 = vunpack.c.l.b16 %v305
        %v337 = vpack.c.b16 %v336, %v335
        %vm339 = vcmask 130048
        %v341 = vsel %vm339, %v329, 0
        %v344 = vsel %vm339, %v330, 0
        %v347 = vsel %vm339, %v331, 0
        %v350 = vsel %vm339, %v332, 0
        %352 = vmatprep.subr.bf16.mxu0 0
        %353 = vmatpush1.bf16.msra.mxu0 0
        %354 = vmatprep.subr.bf16.mxu0 0
        %355 = vmatpush1.bf16.msra.mxu0 0
        %356 = vmatprep.subr.bf16.mxu0 0
        %357 = vmatpush1.bf16.msra.mxu0 0
        %358 = vmatprep.subr.bf16.mxu0 0
        %359 = vmatpush1.bf16.msra.mxu0 0
        %360 = vmatprep.subr.bf16.mxu0 0
        %361 = vmatpush1.bf16.msra.mxu0 0
        %362 = vmatprep.subr.bf16.mxu0 0
        %363 = vmatpush1.bf16.msra.mxu0 0
        %364 = vmatprep.subr.bf16.mxu0 0
        %365 = vmatpush1.bf16.msra.mxu0 0
        %366 = vmatprep.subr.bf16.mxu0 0
        %367 = vmatpush1.bf16.msra.mxu0 %v337
        %368 = vmatprep.subr.bf16.mxu0 0
        %369 = vmatpush2.bf16.msra.mxu0 0
        %370 = vmatprep.subr.bf16.mxu0 0
        %371 = vmatpush2.bf16.msra.mxu0 0
        %372 = vmatprep.subr.bf16.mxu0 0
        %373 = vmatpush2.bf16.msra.mxu0 0
        %374 = vmatprep.subr.bf16.mxu0 0
        %375 = vmatpush2.bf16.msra.mxu0 0
        %376 = vmatprep.subr.bf16.mxu0 0
        %377 = vmatpush2.bf16.msra.mxu0 0
        %378 = vmatprep.subr.bf16.mxu0 0
        %379 = vmatpush2.bf16.msra.mxu0 0
        %380 = vmatprep.subr.bf16.mxu0 0
        %381 = vmatpush2.bf16.msra.mxu0 0
        %382 = vmatprep.subr.bf16.mxu0 0
        %383 = vmatpush2.bf16.msra.mxu0 0
        %384 = vmatprep.mubr.bf16.mxu0 0
        %385 = vmatmul.mubr.bf16.gmra.mxu0 %v341
        %v386 = vpop.f32.mrf.mxu0
        %v387 = vadd.f32 %v311, %v386
        %v388 = vpop.f32.mrf.mxu0
        %v389 = vpop.f32.mrf.mxu0
        %v390 = vadd.f32 %v311, %v389
        %v391 = vpop.f32.mrf.mxu0
        %392 = vmatprep.mubr.bf16.mxu0 0
        %393 = vmatmul.mubr.bf16.gmra.mxu0 %v344
        %v394 = vpop.f32.mrf.mxu0
        %v395 = vadd.f32 %v311, %v394
        %v396 = vpop.f32.mrf.mxu0
        %v397 = vpop.f32.mrf.mxu0
        %v398 = vadd.f32 %v311, %v397
        %v399 = vpop.f32.mrf.mxu0
        %400 = vmatprep.mubr.bf16.mxu0 0
        %401 = vmatmul.mubr.bf16.gmra.mxu0 %v347
        %v402 = vpop.f32.mrf.mxu0
        %v403 = vadd.f32 %v311, %v402
        %v404 = vpop.f32.mrf.mxu0
        %v405 = vpop.f32.mrf.mxu0
        %v406 = vadd.f32 %v311, %v405
        %v407 = vpop.f32.mrf.mxu0
        %408 = vmatprep.mubr.bf16.mxu0 0
        %409 = vmatmul.mubr.bf16.gmra.mxu0 %v350
        %v410 = vpop.f32.mrf.mxu0
        %v411 = vadd.f32 %v311, %v410
        %v412 = vpop.f32.mrf.mxu0
        %v413 = vpop.f32.mrf.mxu0
        %v414 = vadd.f32 %v311, %v413
        %v415 = vpop.f32.mrf.mxu0
        %416 = vdwg.mxu0
        %417 = vst [vmem:[#allocation2] sm:$0xff] %v387
        %418 = vst [vmem:[#allocation2 + $0x8] sm:$0xff] %v390
        %419 = vst [vmem:[#allocation2 + $0x10] sm:$0xff] %v395
        %420 = vst [vmem:[#allocation2 + $0x18] sm:$0xff] %v398
        %421 = vst [vmem:[#allocation2 + $0x20] sm:$0xff] %v403
        %422 = vst [vmem:[#allocation2 + $0x28] sm:$0xff] %v406
        %423 = vst [vmem:[#allocation2 + $0x30] sm:$0xff] %v411
        %424 = vst [vmem:[#allocation2 + $0x38] sm:$0xff] %v414
        %vm425 = vcmask 261120
        %426 = vst.msk [vmem:[#allocation3] sm:$0xff] %vm425, 0.0
        %427 = vst.msk [vmem:[#allocation4] sm:$0xff] %vm425, 0.0
        %v428 = vld [vmem:[%s0] sm:$0xff]
        %v429 = vld [vmem:[%s291] sm:$0xf]
        %v430 = vld [vmem:[%s291 + $0x4] sm:$0xf]
        %v431 = vld [vmem:[%s291 + $0x8] sm:$0xf]
        %v432 = vld [vmem:[%s291 + $0xc] sm:$0xf]
        %p433 = scmp.eq.s32.totalorder %s24, 0
        %s434 = scalar_select %p433, 0, 7
        %s435 = smul.u32 %s434, 8
        %s436 = scalar_lea.vmem [#allocation2], %s435
        %v437 = vld [vmem:[%s436] sm:$0xff]
        %v438 = vld [vmem:[#allocation3] sm:$0xff]
        %v439 = vld [vmem:[#allocation4] sm:$0xff]
        %v440 = vpack.c.bf16 %v438, %v438
        %v445 = vunpack.c.l.b16 %v429
        %v446 = vunpack.c.l.b16 %v430
        %v447 = vunpack.c.l.b16 %v431
        %v448 = vunpack.c.l.b16 %v432
        %v449 = vpack.c.b16 %v446, %v445
        %v450 = vpack.c.b16 %v448, %v447
        %v454 = vsel %vm425, %v440, 0
        %456 = vmatprep.subr.bf16.mxu0 0
        %457 = vmatpush1.bf16.msra.mxu0 0
        %458 = vmatprep.subr.bf16.mxu0 0
        %459 = vmatpush1.bf16.msra.mxu0 0
        %460 = vmatprep.subr.bf16.mxu0 0
        %461 = vmatpush1.bf16.msra.mxu0 0
        %462 = vmatprep.subr.bf16.mxu0 0
        %463 = vmatpush1.bf16.msra.mxu0 0
        %464 = vmatprep.subr.bf16.mxu0 0
        %465 = vmatpush1.bf16.msra.mxu0 0
        %466 = vmatprep.subr.bf16.mxu0 0
        %467 = vmatpush1.bf16.msra.mxu0 0
        %468 = vmatprep.subr.bf16.mxu0 0
        %469 = vmatpush1.bf16.msra.mxu0 %v450
        %470 = vmatprep.subr.bf16.mxu0 0
        %471 = vmatpush1.bf16.msra.mxu0 %v449
        %472 = vmatprep.subr.bf16.mxu0 0
        %473 = vmatpush2.bf16.msra.mxu0 0
        %474 = vmatprep.subr.bf16.mxu0 0
        %475 = vmatpush2.bf16.msra.mxu0 0
        %476 = vmatprep.subr.bf16.mxu0 0
        %477 = vmatpush2.bf16.msra.mxu0 0
        %478 = vmatprep.subr.bf16.mxu0 0
        %479 = vmatpush2.bf16.msra.mxu0 0
        %480 = vmatprep.subr.bf16.mxu0 0
        %481 = vmatpush2.bf16.msra.mxu0 0
        %482 = vmatprep.subr.bf16.mxu0 0
        %483 = vmatpush2.bf16.msra.mxu0 0
        %484 = vmatprep.subr.bf16.mxu0 0
        %485 = vmatpush2.bf16.msra.mxu0 0
        %486 = vmatprep.subr.bf16.mxu0 0
        %487 = vmatpush2.bf16.msra.mxu0 0
        %488 = vmatprep.mubr.bf16.mxu0 0
        %489 = vmatmul.mubr.bf16.gmra.mxu0 %v454
        %v490 = vpop.f32.mrf.mxu0
        %v491 = vadd.f32 0.0, %v490
        %v492 = vpop.f32.mrf.mxu0
        %v493 = vpop.f32.mrf.mxu0
        %v494 = vpop.f32.mrf.mxu0
        %495 = vdwg.mxu0
        %v496 = vadd.f32 %v437, %v491
        %v497 = vxor.u32 %v496, 2147483648
        %v498 = vmul.f32 %v497, 1.442695
        %v499 = vpow.pop %v498
        %v500 = vadd.f32 %v499, 1.0
        %v501 = vrcp.pop %v500
        %v502 = vmul.f32 1.0, %v501
        %v503 = vtanh.pop %v496
        %505 = vrot.lane.b32.xlu0 %v439, 32
        %v506 = vpop.permute.xlu0 %505
        %v508 = vmul.f32 %v502, %v506
        %510 = vrot.lane.b32.xlu0 %v503, 64
        %v511 = vpop.permute.xlu0 %510
        %v513 = vmul.f32 %v502, %v511
        %515 = vrot.lane.b32.xlu0 %v513, 32
        %v516 = vpop.permute.xlu0 %515
        %v518 = vadd.f32 %v508, %v516
        %v519 = vtanh.pop %v518
        %521 = vrot.lane.b32.xlu0 %v519, 64
        %v522 = vpop.permute.xlu0 %521
        %v524 = vmul.f32 %v502, %v522
        %v525 = vstv %s434
        %vm526 = vcmp.lt.s32.totalorder %v525, %v428
        %v527 = vsel %vm526, 1, 0
        %528 = vset.pattern.permute.xlu0 0
        %529 = vperm.xlu0 %528, %v527
        %v530 = vpop.permute.xlu0 %529
        %vm531 = vcmp.eq.s32.totalorder %v530, 1
        %533 = vrot.lane.b32.xlu0 %v438, 96
        %v534 = vpop.permute.xlu0 %533
        %v536 = vsel %vm531, %v524, %v534
        %538 = vrot.lane.b32.xlu0 %v536, 32
        %v539 = vpop.permute.xlu0 %538
        %541 = vst.msk [vmem:[#allocation3] sm:$0xff] %vm425, %v539
        %v542 = vsel %vm531, %v518, %v506
        %544 = vrot.lane.b32.xlu0 %v542, 96
        %v545 = vpop.permute.xlu0 %544
        %547 = vst.msk [vmem:[#allocation4] sm:$0xff] %vm425, %v545
        %v548 = vsel %vm531, %v524, 0.0
        %550 = vrot.lane.b32.xlu0 %v548, 32
        %v551 = vpop.permute.xlu0 %550
        %s553 = scalar_lea.vmem %s274, %s435 [#allocation5]
        %554 = vst.msk [vmem:[%s553] sm:$0xff] %vm425, %v551
        %s555 = scalar_select %p433, 1, 6
        %s556 = smul.u32 %s555, 8
        %s557 = scalar_lea.vmem [#allocation2], %s556
        %v558 = vld [vmem:[%s557] sm:$0xff]
        %v559 = vld [vmem:[#allocation3] sm:$0xff]
        %v560 = vld [vmem:[#allocation4] sm:$0xff]
        %v561 = vpack.c.bf16 %v559, %v559
        %v563 = vsel %vm425, %v561, 0
        %565 = vmatprep.subr.bf16.mxu0 0
        %566 = vmatpush1.bf16.msra.mxu0 0
        %567 = vmatprep.subr.bf16.mxu0 0
        %568 = vmatpush1.bf16.msra.mxu0 0
        %569 = vmatprep.subr.bf16.mxu0 0
        %570 = vmatpush1.bf16.msra.mxu0 0
        %571 = vmatprep.subr.bf16.mxu0 0
        %572 = vmatpush1.bf16.msra.mxu0 0
        %573 = vmatprep.subr.bf16.mxu0 0
        %574 = vmatpush1.bf16.msra.mxu0 0
        %575 = vmatprep.subr.bf16.mxu0 0
        %576 = vmatpush1.bf16.msra.mxu0 0
        %577 = vmatprep.subr.bf16.mxu0 0
        %578 = vmatpush1.bf16.msra.mxu0 %v450
        %579 = vmatprep.subr.bf16.mxu0 0
        %580 = vmatpush1.bf16.msra.mxu0 %v449
        %581 = vmatprep.subr.bf16.mxu0 0
        %582 = vmatpush2.bf16.msra.mxu0 0
        %583 = vmatprep.subr.bf16.mxu0 0
        %584 = vmatpush2.bf16.msra.mxu0 0
        %585 = vmatprep.subr.bf16.mxu0 0
        %586 = vmatpush2.bf16.msra.mxu0 0
        %587 = vmatprep.subr.bf16.mxu0 0
        %588 = vmatpush2.bf16.msra.mxu0 0
        %589 = vmatprep.subr.bf16.mxu0 0
        %590 = vmatpush2.bf16.msra.mxu0 0
        %591 = vmatprep.subr.bf16.mxu0 0
        %592 = vmatpush2.bf16.msra.mxu0 0
        %593 = vmatprep.subr.bf16.mxu0 0
        %594 = vmatpush2.bf16.msra.mxu0 0
        %595 = vmatprep.subr.bf16.mxu0 0
        %596 = vmatpush2.bf16.msra.mxu0 0
        %597 = vmatprep.mubr.bf16.mxu0 0
        %598 = vmatmul.mubr.bf16.gmra.mxu0 %v563
        %v599 = vpop.f32.mrf.mxu0
        %v600 = vadd.f32 0.0, %v599
        %v601 = vpop.f32.mrf.mxu0
        %v602 = vpop.f32.mrf.mxu0
        %v603 = vpop.f32.mrf.mxu0
        %604 = vdwg.mxu0
        %v605 = vadd.f32 %v558, %v600
        %v606 = vxor.u32 %v605, 2147483648
        %v607 = vmul.f32 %v606, 1.442695
        %v608 = vpow.pop %v607
        %v609 = vadd.f32 %v608, 1.0
        %v610 = vrcp.pop %v609
        %v611 = vmul.f32 1.0, %v610
        %v612 = vtanh.pop %v605
        %614 = vrot.lane.b32.xlu0 %v560, 32
        %v615 = vpop.permute.xlu0 %614
        %v617 = vmul.f32 %v611, %v615
        %619 = vrot.lane.b32.xlu0 %v612, 64
        %v620 = vpop.permute.xlu0 %619
        %v622 = vmul.f32 %v611, %v620
        %624 = vrot.lane.b32.xlu0 %v622, 32
        %v625 = vpop.permute.xlu0 %624
        %v627 = vadd.f32 %v617, %v625
        %v628 = vtanh.pop %v627
        %630 = vrot.lane.b32.xlu0 %v628, 64
        %v631 = vpop.permute.xlu0 %630
        %v633 = vmul.f32 %v611, %v631
        %v634 = vstv %s555
        %vm635 = vcmp.lt.s32.totalorder %v634, %v428
        %v636 = vsel %vm635, 1, 0
        %637 = vset.pattern.permute.xlu0 0
        %638 = vperm.xlu0 %637, %v636
        %v639 = vpop.permute.xlu0 %638
        %vm640 = vcmp.eq.s32.totalorder %v639, 1
        %642 = vrot.lane.b32.xlu0 %v559, 96
        %v643 = vpop.permute.xlu0 %642
        %v645 = vsel %vm640, %v633, %v643
        %647 = vrot.lane.b32.xlu0 %v645, 32
        %v648 = vpop.permute.xlu0 %647
        %650 = vst.msk [vmem:[#allocation3] sm:$0xff] %vm425, %v648
        %v651 = vsel %vm640, %v627, %v615
        %653 = vrot.lane.b32.xlu0 %v651, 96
        %v654 = vpop.permute.xlu0 %653
        %656 = vst.msk [vmem:[#allocation4] sm:$0xff] %vm425, %v654
        %v657 = vsel %vm640, %v633, 0.0
        %659 = vrot.lane.b32.xlu0 %v657, 32
        %v660 = vpop.permute.xlu0 %659
        %s662 = scalar_lea.vmem %s274, %s556 [#allocation5]
        %663 = vst.msk [vmem:[%s662] sm:$0xff] %vm425, %v660
        %s664 = scalar_select %p433, 2, 5
        %s665 = smul.u32 %s664, 8
        %s666 = scalar_lea.vmem [#allocation2], %s665
        %v667 = vld [vmem:[%s666] sm:$0xff]
        %v668 = vld [vmem:[#allocation3] sm:$0xff]
        %v669 = vld [vmem:[#allocation4] sm:$0xff]
        %v670 = vpack.c.bf16 %v668, %v668
        %v672 = vsel %vm425, %v670, 0
        %674 = vmatprep.subr.bf16.mxu0 0
        %675 = vmatpush1.bf16.msra.mxu0 0
        %676 = vmatprep.subr.bf16.mxu0 0
        %677 = vmatpush1.bf16.msra.mxu0 0
        %678 = vmatprep.subr.bf16.mxu0 0
        %679 = vmatpush1.bf16.msra.mxu0 0
        %680 = vmatprep.subr.bf16.mxu0 0
        %681 = vmatpush1.bf16.msra.mxu0 0
        %682 = vmatprep.subr.bf16.mxu0 0
        %683 = vmatpush1.bf16.msra.mxu0 0
        %684 = vmatprep.subr.bf16.mxu0 0
        %685 = vmatpush1.bf16.msra.mxu0 0
        %686 = vmatprep.subr.bf16.mxu0 0
        %687 = vmatpush1.bf16.msra.mxu0 %v450
        %688 = vmatprep.subr.bf16.mxu0 0
        %689 = vmatpush1.bf16.msra.mxu0 %v449
        %690 = vmatprep.subr.bf16.mxu0 0
        %691 = vmatpush2.bf16.msra.mxu0 0
        %692 = vmatprep.subr.bf16.mxu0 0
        %693 = vmatpush2.bf16.msra.mxu0 0
        %694 = vmatprep.subr.bf16.mxu0 0
        %695 = vmatpush2.bf16.msra.mxu0 0
        %696 = vmatprep.subr.bf16.mxu0 0
        %697 = vmatpush2.bf16.msra.mxu0 0
        %698 = vmatprep.subr.bf16.mxu0 0
        %699 = vmatpush2.bf16.msra.mxu0 0
        %700 = vmatprep.subr.bf16.mxu0 0
        %701 = vmatpush2.bf16.msra.mxu0 0
        %702 = vmatprep.subr.bf16.mxu0 0
        %703 = vmatpush2.bf16.msra.mxu0 0
        %704 = vmatprep.subr.bf16.mxu0 0
        %705 = vmatpush2.bf16.msra.mxu0 0
        %706 = vmatprep.mubr.bf16.mxu0 0
        %707 = vmatmul.mubr.bf16.gmra.mxu0 %v672
        %v708 = vpop.f32.mrf.mxu0
        %v709 = vadd.f32 0.0, %v708
        %v710 = vpop.f32.mrf.mxu0
        %v711 = vpop.f32.mrf.mxu0
        %v712 = vpop.f32.mrf.mxu0
        %713 = vdwg.mxu0
        %v714 = vadd.f32 %v667, %v709
        %v715 = vxor.u32 %v714, 2147483648
        %v716 = vmul.f32 %v715, 1.442695
        %v717 = vpow.pop %v716
        %v718 = vadd.f32 %v717, 1.0
        %v719 = vrcp.pop %v718
        %v720 = vmul.f32 1.0, %v719
        %v721 = vtanh.pop %v714
        %723 = vrot.lane.b32.xlu0 %v669, 32
        %v724 = vpop.permute.xlu0 %723
        %v726 = vmul.f32 %v720, %v724
        %728 = vrot.lane.b32.xlu0 %v721, 64
        %v729 = vpop.permute.xlu0 %728
        %v731 = vmul.f32 %v720, %v729
        %733 = vrot.lane.b32.xlu0 %v731, 32
        %v734 = vpop.permute.xlu0 %733
        %v736 = vadd.f32 %v726, %v734
        %v737 = vtanh.pop %v736
        %739 = vrot.lane.b32.xlu0 %v737, 64
        %v740 = vpop.permute.xlu0 %739
        %v742 = vmul.f32 %v720, %v740
        %v743 = vstv %s664
        %vm744 = vcmp.lt.s32.totalorder %v743, %v428
        %v745 = vsel %vm744, 1, 0
        %746 = vset.pattern.permute.xlu0 0
        %747 = vperm.xlu0 %746, %v745
        %v748 = vpop.permute.xlu0 %747
        %vm749 = vcmp.eq.s32.totalorder %v748, 1
        %751 = vrot.lane.b32.xlu0 %v668, 96
        %v752 = vpop.permute.xlu0 %751
        %v754 = vsel %vm749, %v742, %v752
        %756 = vrot.lane.b32.xlu0 %v754, 32
        %v757 = vpop.permute.xlu0 %756
        %759 = vst.msk [vmem:[#allocation3] sm:$0xff] %vm425, %v757
        %v760 = vsel %vm749, %v736, %v724
        %762 = vrot.lane.b32.xlu0 %v760, 96
        %v763 = vpop.permute.xlu0 %762
        %765 = vst.msk [vmem:[#allocation4] sm:$0xff] %vm425, %v763
        %v766 = vsel %vm749, %v742, 0.0
        %768 = vrot.lane.b32.xlu0 %v766, 32
        %v769 = vpop.permute.xlu0 %768
        %s771 = scalar_lea.vmem %s274, %s665 [#allocation5]
        %772 = vst.msk [vmem:[%s771] sm:$0xff] %vm425, %v769
        %s773 = scalar_select %p433, 3, 4
        %s774 = smul.u32 %s773, 8
        %s775 = scalar_lea.vmem [#allocation2], %s774
        %v776 = vld [vmem:[%s775] sm:$0xff]
        %v777 = vld [vmem:[#allocation3] sm:$0xff]
        %v778 = vld [vmem:[#allocation4] sm:$0xff]
        %v779 = vpack.c.bf16 %v777, %v777
        %v781 = vsel %vm425, %v779, 0
        %783 = vmatprep.subr.bf16.mxu0 0
        %784 = vmatpush1.bf16.msra.mxu0 0
        %785 = vmatprep.subr.bf16.mxu0 0
        %786 = vmatpush1.bf16.msra.mxu0 0
        %787 = vmatprep.subr.bf16.mxu0 0
        %788 = vmatpush1.bf16.msra.mxu0 0
        %789 = vmatprep.subr.bf16.mxu0 0
        %790 = vmatpush1.bf16.msra.mxu0 0
        %791 = vmatprep.subr.bf16.mxu0 0
        %792 = vmatpush1.bf16.msra.mxu0 0
        %793 = vmatprep.subr.bf16.mxu0 0
        %794 = vmatpush1.bf16.msra.mxu0 0
        %795 = vmatprep.subr.bf16.mxu0 0
        %796 = vmatpush1.bf16.msra.mxu0 %v450
        %797 = vmatprep.subr.bf16.mxu0 0
        %798 = vmatpush1.bf16.msra.mxu0 %v449
        %799 = vmatprep.subr.bf16.mxu0 0
        %800 = vmatpush2.bf16.msra.mxu0 0
        %801 = vmatprep.subr.bf16.mxu0 0
        %802 = vmatpush2.bf16.msra.mxu0 0
        %803 = vmatprep.subr.bf16.mxu0 0
        %804 = vmatpush2.bf16.msra.mxu0 0
        %805 = vmatprep.subr.bf16.mxu0 0
        %806 = vmatpush2.bf16.msra.mxu0 0
        %807 = vmatprep.subr.bf16.mxu0 0
        %808 = vmatpush2.bf16.msra.mxu0 0
        %809 = vmatprep.subr.bf16.mxu0 0
        %810 = vmatpush2.bf16.msra.mxu0 0
        %811 = vmatprep.subr.bf16.mxu0 0
        %812 = vmatpush2.bf16.msra.mxu0 0
        %813 = vmatprep.subr.bf16.mxu0 0
        %814 = vmatpush2.bf16.msra.mxu0 0
        %815 = vmatprep.mubr.bf16.mxu0 0
        %816 = vmatmul.mubr.bf16.gmra.mxu0 %v781
        %v817 = vpop.f32.mrf.mxu0
        %v818 = vadd.f32 0.0, %v817
        %v819 = vpop.f32.mrf.mxu0
        %v820 = vpop.f32.mrf.mxu0
        %v821 = vpop.f32.mrf.mxu0
        %822 = vdwg.mxu0
        %v823 = vadd.f32 %v776, %v818
        %v824 = vxor.u32 %v823, 2147483648
        %v825 = vmul.f32 %v824, 1.442695
        %v826 = vpow.pop %v825
        %v827 = vadd.f32 %v826, 1.0
        %v828 = vrcp.pop %v827
        %v829 = vmul.f32 1.0, %v828
        %v830 = vtanh.pop %v823
        %832 = vrot.lane.b32.xlu0 %v778, 32
        %v833 = vpop.permute.xlu0 %832
        %v835 = vmul.f32 %v829, %v833
        %837 = vrot.lane.b32.xlu0 %v830, 64
        %v838 = vpop.permute.xlu0 %837
        %v840 = vmul.f32 %v829, %v838
        %842 = vrot.lane.b32.xlu0 %v840, 32
        %v843 = vpop.permute.xlu0 %842
        %v845 = vadd.f32 %v835, %v843
        %v846 = vtanh.pop %v845
        %848 = vrot.lane.b32.xlu0 %v846, 64
        %v849 = vpop.permute.xlu0 %848
        %v851 = vmul.f32 %v829, %v849
        %v852 = vstv %s773
        %vm853 = vcmp.lt.s32.totalorder %v852, %v428
        %v854 = vsel %vm853, 1, 0
        %855 = vset.pattern.permute.xlu0 0
        %856 = vperm.xlu0 %855, %v854
        %v857 = vpop.permute.xlu0 %856
        %vm858 = vcmp.eq.s32.totalorder %v857, 1
        %860 = vrot.lane.b32.xlu0 %v777, 96
        %v861 = vpop.permute.xlu0 %860
        %v863 = vsel %vm858, %v851, %v861
        %865 = vrot.lane.b32.xlu0 %v863, 32
        %v866 = vpop.permute.xlu0 %865
        %868 = vst.msk [vmem:[#allocation3] sm:$0xff] %vm425, %v866
        %v869 = vsel %vm858, %v845, %v833
        %871 = vrot.lane.b32.xlu0 %v869, 96
        %v872 = vpop.permute.xlu0 %871
        %874 = vst.msk [vmem:[#allocation4] sm:$0xff] %vm425, %v872
        %v875 = vsel %vm858, %v851, 0.0
        %877 = vrot.lane.b32.xlu0 %v875, 32
        %v878 = vpop.permute.xlu0 %877
        %s880 = scalar_lea.vmem %s274, %s774 [#allocation5]
        %881 = vst.msk [vmem:[%s880] sm:$0xff] %vm425, %v878
        %s882 = scalar_select %p433, 4, 3
        %s883 = smul.u32 %s882, 8
        %s884 = scalar_lea.vmem [#allocation2], %s883
        %v885 = vld [vmem:[%s884] sm:$0xff]
        %v886 = vld [vmem:[#allocation3] sm:$0xff]
        %v887 = vld [vmem:[#allocation4] sm:$0xff]
        %v888 = vpack.c.bf16 %v886, %v886
        %v890 = vsel %vm425, %v888, 0
        %892 = vmatprep.subr.bf16.mxu0 0
        %893 = vmatpush1.bf16.msra.mxu0 0
        %894 = vmatprep.subr.bf16.mxu0 0
        %895 = vmatpush1.bf16.msra.mxu0 0
        %896 = vmatprep.subr.bf16.mxu0 0
        %897 = vmatpush1.bf16.msra.mxu0 0
        %898 = vmatprep.subr.bf16.mxu0 0
        %899 = vmatpush1.bf16.msra.mxu0 0
        %900 = vmatprep.subr.bf16.mxu0 0
        %901 = vmatpush1.bf16.msra.mxu0 0
        %902 = vmatprep.subr.bf16.mxu0 0
        %903 = vmatpush1.bf16.msra.mxu0 0
        %904 = vmatprep.subr.bf16.mxu0 0
        %905 = vmatpush1.bf16.msra.mxu0 %v450
        %906 = vmatprep.subr.bf16.mxu0 0
        %907 = vmatpush1.bf16.msra.mxu0 %v449
        %908 = vmatprep.subr.bf16.mxu0 0
        %909 = vmatpush2.bf16.msra.mxu0 0
        %910 = vmatprep.subr.bf16.mxu0 0
        %911 = vmatpush2.bf16.msra.mxu0 0
        %912 = vmatprep.subr.bf16.mxu0 0
        %913 = vmatpush2.bf16.msra.mxu0 0
        %914 = vmatprep.subr.bf16.mxu0 0
        %915 = vmatpush2.bf16.msra.mxu0 0
        %916 = vmatprep.subr.bf16.mxu0 0
        %917 = vmatpush2.bf16.msra.mxu0 0
        %918 = vmatprep.subr.bf16.mxu0 0
        %919 = vmatpush2.bf16.msra.mxu0 0
        %920 = vmatprep.subr.bf16.mxu0 0
        %921 = vmatpush2.bf16.msra.mxu0 0
        %922 = vmatprep.subr.bf16.mxu0 0
        %923 = vmatpush2.bf16.msra.mxu0 0
        %924 = vmatprep.mubr.bf16.mxu0 0
        %925 = vmatmul.mubr.bf16.gmra.mxu0 %v890
        %v926 = vpop.f32.mrf.mxu0
        %v927 = vadd.f32 0.0, %v926
        %v928 = vpop.f32.mrf.mxu0
        %v929 = vpop.f32.mrf.mxu0
        %v930 = vpop.f32.mrf.mxu0
        %931 = vdwg.mxu0
        %v932 = vadd.f32 %v885, %v927
        %v933 = vxor.u32 %v932, 2147483648
        %v934 = vmul.f32 %v933, 1.442695
        %v935 = vpow.pop %v934
        %v936 = vadd.f32 %v935, 1.0
        %v937 = vrcp.pop %v936
        %v938 = vmul.f32 1.0, %v937
        %v939 = vtanh.pop %v932
        %941 = vrot.lane.b32.xlu0 %v887, 32
        %v942 = vpop.permute.xlu0 %941
        %v944 = vmul.f32 %v938, %v942
        %946 = vrot.lane.b32.xlu0 %v939, 64
        %v947 = vpop.permute.xlu0 %946
        %v949 = vmul.f32 %v938, %v947
        %951 = vrot.lane.b32.xlu0 %v949, 32
        %v952 = vpop.permute.xlu0 %951
        %v954 = vadd.f32 %v944, %v952
        %v955 = vtanh.pop %v954
        %957 = vrot.lane.b32.xlu0 %v955, 64
        %v958 = vpop.permute.xlu0 %957
        %v960 = vmul.f32 %v938, %v958
        %v961 = vstv %s882
        %vm962 = vcmp.lt.s32.totalorder %v961, %v428
        %v963 = vsel %vm962, 1, 0
        %964 = vset.pattern.permute.xlu0 0
        %965 = vperm.xlu0 %964, %v963
        %v966 = vpop.permute.xlu0 %965
        %vm967 = vcmp.eq.s32.totalorder %v966, 1
        %969 = vrot.lane.b32.xlu0 %v886, 96
        %v970 = vpop.permute.xlu0 %969
        %v972 = vsel %vm967, %v960, %v970
        %974 = vrot.lane.b32.xlu0 %v972, 32
        %v975 = vpop.permute.xlu0 %974
        %977 = vst.msk [vmem:[#allocation3] sm:$0xff] %vm425, %v975
        %v978 = vsel %vm967, %v954, %v942
        %980 = vrot.lane.b32.xlu0 %v978, 96
        %v981 = vpop.permute.xlu0 %980
        %983 = vst.msk [vmem:[#allocation4] sm:$0xff] %vm425, %v981
        %v984 = vsel %vm967, %v960, 0.0
        %986 = vrot.lane.b32.xlu0 %v984, 32
        %v987 = vpop.permute.xlu0 %986
        %s989 = scalar_lea.vmem %s274, %s883 [#allocation5]
        %990 = vst.msk [vmem:[%s989] sm:$0xff] %vm425, %v987
        %s991 = scalar_select %p433, 5, 2
        %s992 = smul.u32 %s991, 8
        %s993 = scalar_lea.vmem [#allocation2], %s992
        %v994 = vld [vmem:[%s993] sm:$0xff]
        %v995 = vld [vmem:[#allocation3] sm:$0xff]
        %v996 = vld [vmem:[#allocation4] sm:$0xff]
        %v997 = vpack.c.bf16 %v995, %v995
        %v999 = vsel %vm425, %v997, 0
        %1001 = vmatprep.subr.bf16.mxu0 0
        %1002 = vmatpush1.bf16.msra.mxu0 0
        %1003 = vmatprep.subr.bf16.mxu0 0
        %1004 = vmatpush1.bf16.msra.mxu0 0
        %1005 = vmatprep.subr.bf16.mxu0 0
        %1006 = vmatpush1.bf16.msra.mxu0 0
        %1007 = vmatprep.subr.bf16.mxu0 0
        %1008 = vmatpush1.bf16.msra.mxu0 0
        %1009 = vmatprep.subr.bf16.mxu0 0
        %1010 = vmatpush1.bf16.msra.mxu0 0
        %1011 = vmatprep.subr.bf16.mxu0 0
        %1012 = vmatpush1.bf16.msra.mxu0 0
        %1013 = vmatprep.subr.bf16.mxu0 0
        %1014 = vmatpush1.bf16.msra.mxu0 %v450
        %1015 = vmatprep.subr.bf16.mxu0 0
        %1016 = vmatpush1.bf16.msra.mxu0 %v449
        %1017 = vmatprep.subr.bf16.mxu0 0
        %1018 = vmatpush2.bf16.msra.mxu0 0
        %1019 = vmatprep.subr.bf16.mxu0 0
        %1020 = vmatpush2.bf16.msra.mxu0 0
        %1021 = vmatprep.subr.bf16.mxu0 0
        %1022 = vmatpush2.bf16.msra.mxu0 0
        %1023 = vmatprep.subr.bf16.mxu0 0
        %1024 = vmatpush2.bf16.msra.mxu0 0
        %1025 = vmatprep.subr.bf16.mxu0 0
        %1026 = vmatpush2.bf16.msra.mxu0 0
        %1027 = vmatprep.subr.bf16.mxu0 0
        %1028 = vmatpush2.bf16.msra.mxu0 0
        %1029 = vmatprep.subr.bf16.mxu0 0
        %1030 = vmatpush2.bf16.msra.mxu0 0
        %1031 = vmatprep.subr.bf16.mxu0 0
        %1032 = vmatpush2.bf16.msra.mxu0 0
        %1033 = vmatprep.mubr.bf16.mxu0 0
        %1034 = vmatmul.mubr.bf16.gmra.mxu0 %v999
        %v1035 = vpop.f32.mrf.mxu0
        %v1036 = vadd.f32 0.0, %v1035
        %v1037 = vpop.f32.mrf.mxu0
        %v1038 = vpop.f32.mrf.mxu0
        %v1039 = vpop.f32.mrf.mxu0
        %1040 = vdwg.mxu0
        %v1041 = vadd.f32 %v994, %v1036
        %v1042 = vxor.u32 %v1041, 2147483648
        %v1043 = vmul.f32 %v1042, 1.442695
        %v1044 = vpow.pop %v1043
        %v1045 = vadd.f32 %v1044, 1.0
        %v1046 = vrcp.pop %v1045
        %v1047 = vmul.f32 1.0, %v1046
        %v1048 = vtanh.pop %v1041
        %1050 = vrot.lane.b32.xlu0 %v996, 32
        %v1051 = vpop.permute.xlu0 %1050
        %v1053 = vmul.f32 %v1047, %v1051
        %1055 = vrot.lane.b32.xlu0 %v1048, 64
        %v1056 = vpop.permute.xlu0 %1055
        %v1058 = vmul.f32 %v1047, %v1056
        %1060 = vrot.lane.b32.xlu0 %v1058, 32
        %v1061 = vpop.permute.xlu0 %1060
        %v1063 = vadd.f32 %v1053, %v1061
        %v1064 = vtanh.pop %v1063
        %1066 = vrot.lane.b32.xlu0 %v1064, 64
        %v1067 = vpop.permute.xlu0 %1066
        %v1069 = vmul.f32 %v1047, %v1067
        %v1070 = vstv %s991
        %vm1071 = vcmp.lt.s32.totalorder %v1070, %v428
        %v1072 = vsel %vm1071, 1, 0
        %1073 = vset.pattern.permute.xlu0 0
        %1074 = vperm.xlu0 %1073, %v1072
        %v1075 = vpop.permute.xlu0 %1074
        %vm1076 = vcmp.eq.s32.totalorder %v1075, 1
        %1078 = vrot.lane.b32.xlu0 %v995, 96
        %v1079 = vpop.permute.xlu0 %1078
        %v1081 = vsel %vm1076, %v1069, %v1079
        %1083 = vrot.lane.b32.xlu0 %v1081, 32
        %v1084 = vpop.permute.xlu0 %1083
        %1086 = vst.msk [vmem:[#allocation3] sm:$0xff] %vm425, %v1084
        %v1087 = vsel %vm1076, %v1063, %v1051
        %1089 = vrot.lane.b32.xlu0 %v1087, 96
        %v1090 = vpop.permute.xlu0 %1089
        %1092 = vst.msk [vmem:[#allocation4] sm:$0xff] %vm425, %v1090
        %v1093 = vsel %vm1076, %v1069, 0.0
        %1095 = vrot.lane.b32.xlu0 %v1093, 32
        %v1096 = vpop.permute.xlu0 %1095
        %s1098 = scalar_lea.vmem %s274, %s992 [#allocation5]
        %1099 = vst.msk [vmem:[%s1098] sm:$0xff] %vm425, %v1096
        %s1100 = scalar_select %p433, 6, 1
        %s1101 = smul.u32 %s1100, 8
        %s1102 = scalar_lea.vmem [#allocation2], %s1101
        %v1103 = vld [vmem:[%s1102] sm:$0xff]
        %v1104 = vld [vmem:[#allocation3] sm:$0xff]
        %v1105 = vld [vmem:[#allocation4] sm:$0xff]
        %v1106 = vpack.c.bf16 %v1104, %v1104
        %v1108 = vsel %vm425, %v1106, 0
        %1110 = vmatprep.subr.bf16.mxu0 0
        %1111 = vmatpush1.bf16.msra.mxu0 0
        %1112 = vmatprep.subr.bf16.mxu0 0
        %1113 = vmatpush1.bf16.msra.mxu0 0
        %1114 = vmatprep.subr.bf16.mxu0 0
        %1115 = vmatpush1.bf16.msra.mxu0 0
        %1116 = vmatprep.subr.bf16.mxu0 0
        %1117 = vmatpush1.bf16.msra.mxu0 0
        %1118 = vmatprep.subr.bf16.mxu0 0
        %1119 = vmatpush1.bf16.msra.mxu0 0
        %1120 = vmatprep.subr.bf16.mxu0 0
        %1121 = vmatpush1.bf16.msra.mxu0 0
        %1122 = vmatprep.subr.bf16.mxu0 0
        %1123 = vmatpush1.bf16.msra.mxu0 %v450
        %1124 = vmatprep.subr.bf16.mxu0 0
        %1125 = vmatpush1.bf16.msra.mxu0 %v449
        %1126 = vmatprep.subr.bf16.mxu0 0
        %1127 = vmatpush2.bf16.msra.mxu0 0
        %1128 = vmatprep.subr.bf16.mxu0 0
        %1129 = vmatpush2.bf16.msra.mxu0 0
        %1130 = vmatprep.subr.bf16.mxu0 0
        %1131 = vmatpush2.bf16.msra.mxu0 0
        %1132 = vmatprep.subr.bf16.mxu0 0
        %1133 = vmatpush2.bf16.msra.mxu0 0
        %1134 = vmatprep.subr.bf16.mxu0 0
        %1135 = vmatpush2.bf16.msra.mxu0 0
        %1136 = vmatprep.subr.bf16.mxu0 0
        %1137 = vmatpush2.bf16.msra.mxu0 0
        %1138 = vmatprep.subr.bf16.mxu0 0
        %1139 = vmatpush2.bf16.msra.mxu0 0
        %1140 = vmatprep.subr.bf16.mxu0 0
        %1141 = vmatpush2.bf16.msra.mxu0 0
        %1142 = vmatprep.mubr.bf16.mxu0 0
        %1143 = vmatmul.mubr.bf16.gmra.mxu0 %v1108
        %v1144 = vpop.f32.mrf.mxu0
        %v1145 = vadd.f32 0.0, %v1144
        %v1146 = vpop.f32.mrf.mxu0
        %v1147 = vpop.f32.mrf.mxu0
        %v1148 = vpop.f32.mrf.mxu0
        %1149 = vdwg.mxu0
        %v1150 = vadd.f32 %v1103, %v1145
        %v1151 = vxor.u32 %v1150, 2147483648
        %v1152 = vmul.f32 %v1151, 1.442695
        %v1153 = vpow.pop %v1152
        %v1154 = vadd.f32 %v1153, 1.0
        %v1155 = vrcp.pop %v1154
        %v1156 = vmul.f32 1.0, %v1155
        %v1157 = vtanh.pop %v1150
        %1159 = vrot.lane.b32.xlu0 %v1105, 32
        %v1160 = vpop.permute.xlu0 %1159
        %v1162 = vmul.f32 %v1156, %v1160
        %1164 = vrot.lane.b32.xlu0 %v1157, 64
        %v1165 = vpop.permute.xlu0 %1164
        %v1167 = vmul.f32 %v1156, %v1165
        %1169 = vrot.lane.b32.xlu0 %v1167, 32
        %v1170 = vpop.permute.xlu0 %1169
        %v1172 = vadd.f32 %v1162, %v1170
        %v1173 = vtanh.pop %v1172
        %1175 = vrot.lane.b32.xlu0 %v1173, 64
        %v1176 = vpop.permute.xlu0 %1175
        %v1178 = vmul.f32 %v1156, %v1176
        %v1179 = vstv %s1100
        %vm1180 = vcmp.lt.s32.totalorder %v1179, %v428
        %v1181 = vsel %vm1180, 1, 0
        %1182 = vset.pattern.permute.xlu0 0
        %1183 = vperm.xlu0 %1182, %v1181
        %v1184 = vpop.permute.xlu0 %1183
        %vm1185 = vcmp.eq.s32.totalorder %v1184, 1
        %1187 = vrot.lane.b32.xlu0 %v1104, 96
        %v1188 = vpop.permute.xlu0 %1187
        %v1190 = vsel %vm1185, %v1178, %v1188
        %1192 = vrot.lane.b32.xlu0 %v1190, 32
        %v1193 = vpop.permute.xlu0 %1192
        %1195 = vst.msk [vmem:[#allocation3] sm:$0xff] %vm425, %v1193
        %v1196 = vsel %vm1185, %v1172, %v1160
        %1198 = vrot.lane.b32.xlu0 %v1196, 96
        %v1199 = vpop.permute.xlu0 %1198
        %1201 = vst.msk [vmem:[#allocation4] sm:$0xff] %vm425, %v1199
        %v1202 = vsel %vm1185, %v1178, 0.0
        %1204 = vrot.lane.b32.xlu0 %v1202, 32
        %v1205 = vpop.permute.xlu0 %1204
        %s1207 = scalar_lea.vmem %s274, %s1101 [#allocation5]
        %1208 = vst.msk [vmem:[%s1207] sm:$0xff] %vm425, %v1205
        %s1209 = scalar_select %p433, 7, 0
        %s1210 = smul.u32 %s1209, 8
        %s1211 = scalar_lea.vmem [#allocation2], %s1210
        %v1212 = vld [vmem:[%s1211] sm:$0xff]
        %v1213 = vld [vmem:[#allocation3] sm:$0xff]
        %v1214 = vld [vmem:[#allocation4] sm:$0xff]
        %v1215 = vpack.c.bf16 %v1213, %v1213
        %v1217 = vsel %vm425, %v1215, 0
        %1219 = vmatprep.subr.bf16.mxu0 0
        %1220 = vmatpush1.bf16.msra.mxu0 0
        %1221 = vmatprep.subr.bf16.mxu0 0
        %1222 = vmatpush1.bf16.msra.mxu0 0
        %1223 = vmatprep.subr.bf16.mxu0 0
        %1224 = vmatpush1.bf16.msra.mxu0 0
        %1225 = vmatprep.subr.bf16.mxu0 0
        %1226 = vmatpush1.bf16.msra.mxu0 0
        %1227 = vmatprep.subr.bf16.mxu0 0
        %1228 = vmatpush1.bf16.msra.mxu0 0
        %1229 = vmatprep.subr.bf16.mxu0 0
        %1230 = vmatpush1.bf16.msra.mxu0 0
        %1231 = vmatprep.subr.bf16.mxu0 0
        %1232 = vmatpush1.bf16.msra.mxu0 %v450
        %1233 = vmatprep.subr.bf16.mxu0 0
        %1234 = vmatpush1.bf16.msra.mxu0 %v449
        %1235 = vmatprep.subr.bf16.mxu0 0
        %1236 = vmatpush2.bf16.msra.mxu0 0
        %1237 = vmatprep.subr.bf16.mxu0 0
        %1238 = vmatpush2.bf16.msra.mxu0 0
        %1239 = vmatprep.subr.bf16.mxu0 0
        %1240 = vmatpush2.bf16.msra.mxu0 0
        %1241 = vmatprep.subr.bf16.mxu0 0
        %1242 = vmatpush2.bf16.msra.mxu0 0
        %1243 = vmatprep.subr.bf16.mxu0 0
        %1244 = vmatpush2.bf16.msra.mxu0 0
        %1245 = vmatprep.subr.bf16.mxu0 0
        %1246 = vmatpush2.bf16.msra.mxu0 0
        %1247 = vmatprep.subr.bf16.mxu0 0
        %1248 = vmatpush2.bf16.msra.mxu0 0
        %1249 = vmatprep.subr.bf16.mxu0 0
        %1250 = vmatpush2.bf16.msra.mxu0 0
        %1251 = vmatprep.mubr.bf16.mxu0 0
        %1252 = vmatmul.mubr.bf16.gmra.mxu0 %v1217
        %v1253 = vpop.f32.mrf.mxu0
        %v1254 = vadd.f32 0.0, %v1253
        %v1255 = vpop.f32.mrf.mxu0
        %v1256 = vpop.f32.mrf.mxu0
        %v1257 = vpop.f32.mrf.mxu0
        %1258 = vdwg.mxu0
        %v1259 = vadd.f32 %v1212, %v1254
        %v1260 = vxor.u32 %v1259, 2147483648
        %v1261 = vmul.f32 %v1260, 1.442695
        %v1262 = vpow.pop %v1261
        %v1263 = vadd.f32 %v1262, 1.0
        %v1264 = vrcp.pop %v1263
        %v1265 = vmul.f32 1.0, %v1264
        %v1266 = vtanh.pop %v1259
        %1268 = vrot.lane.b32.xlu0 %v1214, 32
        %v1269 = vpop.permute.xlu0 %1268
        %v1271 = vmul.f32 %v1265, %v1269
        %1273 = vrot.lane.b32.xlu0 %v1266, 64
        %v1274 = vpop.permute.xlu0 %1273
        %v1276 = vmul.f32 %v1265, %v1274
        %1278 = vrot.lane.b32.xlu0 %v1276, 32
        %v1279 = vpop.permute.xlu0 %1278
        %v1281 = vadd.f32 %v1271, %v1279
        %v1282 = vtanh.pop %v1281
        %1284 = vrot.lane.b32.xlu0 %v1282, 64
        %v1285 = vpop.permute.xlu0 %1284
        %v1287 = vmul.f32 %v1265, %v1285
        %v1288 = vstv %s1209
        %vm1289 = vcmp.lt.s32.totalorder %v1288, %v428
        %v1290 = vsel %vm1289, 1, 0
        %1291 = vset.pattern.permute.xlu0 0
        %1292 = vperm.xlu0 %1291, %v1290
        %v1293 = vpop.permute.xlu0 %1292
        %vm1294 = vcmp.eq.s32.totalorder %v1293, 1
        %1296 = vrot.lane.b32.xlu0 %v1213, 96
        %v1297 = vpop.permute.xlu0 %1296
        %v1299 = vsel %vm1294, %v1287, %v1297
        %1301 = vrot.lane.b32.xlu0 %v1299, 32
        %v1302 = vpop.permute.xlu0 %1301
        %1304 = vst.msk [vmem:[#allocation3] sm:$0xff] %vm425, %v1302
        %v1305 = vsel %vm1294, %v1281, %v1269
        %1307 = vrot.lane.b32.xlu0 %v1305, 96
        %v1308 = vpop.permute.xlu0 %1307
        %1310 = vst.msk [vmem:[#allocation4] sm:$0xff] %vm425, %v1308
        %v1311 = vsel %vm1294, %v1287, 0.0
        %1313 = vrot.lane.b32.xlu0 %v1311, 32
        %v1314 = vpop.permute.xlu0 %1313
        %s1316 = scalar_lea.vmem %s274, %s1210 [#allocation5]
        %1317 = vst.msk [vmem:[%s1316] sm:$0xff] %vm425, %v1314
        %v1318 = vld [vmem:[#allocation3] sm:$0xff]
        %1319 = vst.msk [vmem:[%s281] sm:$0xff] %vm425, %v1318
        %s1320 = sand.u32 %s152, 1
        %s1321 = scalar_lea.sflag [#allocation6], %s1320
        %s1322 = sand.u32 %s152, 1
        %s1323 = smul.addr %s1322, 64
        %s1324 = scalar_lea.vmem [#allocation5], %s1323
        %s1325 = sand.u32 %s178, 1
        %s1326 = scalar_lea.sflag [#allocation8], %s1325
        %s1327 = sand.u32 %s178, 1
        %s1328 = smul.addr %s1327, 8
        %s1329 = scalar_lea.vmem [#allocation7], %s1328
        // Predicated region
        $region41: #{tpu_custom_call.1} parent=39 // pred_check
          %p1330 = pneg %p162
        $region42: #{tpu_custom_call.1} parent=39 // pred_check_branch
          %1332 = sbr.rel (%p1330) target = $region44
        $region43: #{tpu_custom_call.1} parent=39 // pred_region
          %s1334 = ssub.s32 1024, 1024
          %1335 = vsyncadd %s1321, %s1334
          %s1336 = smul.addr %s24, 8
          %s1337 = smul.addr %s1336, 128
          %s1338 = scalar_lea.hbm %s5, %s1337
          %s1339 = sshll.u32 %s1324, 4
          %s1340 = int_to_ptr.vmem [resolvable:$true] %s1339
          %1345 = dma.vmem_to_hbm [thread:$0]  %s1340, 1024, %s1338, %s1321, 128, 128, 8
        $region44: #{tpu_custom_call.1} parent=39 // pred_fallthru
          _
        // Predicated region
        $region45: #{tpu_custom_call.1} parent=39 // pred_check
          %p1346 = pneg %p188
        $region46: #{tpu_custom_call.1} parent=39 // pred_check_branch
          %1348 = sbr.rel (%p1346) target = $region48
        $region47: #{tpu_custom_call.1} parent=39 // pred_region
          %s1350 = ssub.s32 128, 128
          %1351 = vsyncadd %s1326, %s1350
          %s1352 = smul.addr %s24, 128
          %s1353 = scalar_lea.hbm %s6, %s1352
          %s1355 = sshll.u32 %s1329, 4
          %s1356 = int_to_ptr.vmem [resolvable:$true] %s1355
          %1358 = dma.vmem_to_hbm [thread:$0]  %s1356, 128, %s1353, %s1326
        $region48: #{tpu_custom_call.1} parent=39 // pred_fallthru
          _
      $region40: #{tpu_custom_call.1} parent=5 // pred_fallthru
        _
      %p1359 = scmp.le.s32.totalorder 2, %s19
      // Predicated region
      $region49: #{tpu_custom_call.1} parent=5 // pred_check
        %p1360 = pneg %p1359
      $region50: #{tpu_custom_call.1} parent=5 // pred_check_branch
        %1362 = sbr.rel (%p1360) target = $region52
      $region51: #{tpu_custom_call.1} parent=5 // pred_region
        %s1363 = ssub.s32 %s19, 2
        // Predicated region
        $region53: #{tpu_custom_call.1} parent=51 // pred_check
          %p1364 = pneg %p168
        $region54: #{tpu_custom_call.1} parent=51 // pred_check_branch
          %1366 = sbr.rel (%p1364) target = $region56
        $region55: #{tpu_custom_call.1} parent=51 // pred_region
          %s1367 = sand.u32 %s153, 1
          %s1368 = scalar_lea.sflag [#allocation6], %s1367
          %s1369 = sand.u32 %s153, 1
          %s1370 = smul.addr %s1369, 64
          %s1371 = scalar_lea.vmem [#allocation5], %s1370
          %1372 = dma.done %s1368, 1024
        $region56: #{tpu_custom_call.1} parent=51 // pred_fallthru
          _
        // Predicated region
        $region57: #{tpu_custom_call.1} parent=51 // pred_check
          %p1373 = pneg %p194
        $region58: #{tpu_custom_call.1} parent=51 // pred_check_branch
          %1375 = sbr.rel (%p1373) target = $region60
        $region59: #{tpu_custom_call.1} parent=51 // pred_region
          %s1376 = sand.u32 %s179, 1
          %s1377 = scalar_lea.sflag [#allocation8], %s1376
          %s1378 = sand.u32 %s179, 1
          %s1379 = smul.addr %s1378, 8
          %s1380 = scalar_lea.vmem [#allocation7], %s1379
          %1381 = dma.done %s1377, 128
        $region60: #{tpu_custom_call.1} parent=51 // pred_fallthru
          _
      $region52: #{tpu_custom_call.1} parent=5 // pred_fallthru
        _
    $region6: #{tpu_custom_call.1} parent=1 // loop_footer
      %s23 = sadd.s32 1, %s19
    $region7: #{tpu_custom_call.1} parent=1 // loop_footer_branch
      %18 = sbr.rel target = $region3
    $region8: #{tpu_custom_call.1} parent=1 // loop_exit
      _
    %1382 = vsyncpa [#allocation6], 1
    %s1383 = scalar_lea.sflag [#allocation6], 1
    %1384 = vsyncpa %s1383, 1
    %1385 = vsyncpa [#allocation8], 1
    %s1386 = scalar_lea.sflag [#allocation8], 1
    %1387 = vsyncpa %s1386, 1

</llo_original>
